<compile_context>
chip_gen: v5e
topology: v5e:2x2
jax: 0.10.0
libtpu: 0.0.40
codegen_flags: <defaults>
</compile_context>

<pallas_src>
import functools

import numpy as np
import jax
import jax.numpy as jnp
from jax.experimental import pallas as pl
from jax.experimental.pallas import tpu as pltpu

MAXLEN = 32   # module-level MAXLEN (small synthetic value here)
C_IN = 21     # amino-acid channels


def _round_up(v, m):
    return (v + m - 1) // m * m


# ------------------------------ fused Pallas kernel ------------------------------


def _fused_forward_kernel(*refs, kernels, nb_filters, fc_depth, batch, lp8, maxlen):
    """Whole DeepGOPlus forward on VMEM-resident tensors.

    refs layout (all VMEM):
      x_ref                         (batch*lp8 + slack, C_IN) conv-padded, flattened, zero-padded
      [cw_0, cb_0, cw_1, cb_1, ..]  per conv branch: weights (k, C_IN, F), bias (1, F)
      [fw_0, fb_0, ..., fw_L, fb_L] per FC layer (incl. final): (D_in, D_out), (1, D_out)
      out_ref                       (batch, nb_classes)
    """
    nb = len(kernels)
    x_ref = refs[0]
    conv_refs = refs[1:1 + 2 * nb]
    fc_refs = refs[1 + 2 * nb:-1]
    out_ref = refs[-1]

    rows = batch * lp8
    feats = []
    for bi, k in enumerate(kernels):
        w_ref = conv_refs[2 * bi]          # (k, C_IN, F)
        b_ref = conv_refs[2 * bi + 1]      # (1, F)
        l_out = maxlen - k + 3             # Conv1d(padding=1) output length == pool window

        # Conv1d as a k-step accumulation of shifted 2-D matmuls; batch is folded into M.
        acc = jnp.dot(x_ref[pl.ds(0, rows), :], w_ref[0],
                      preferred_element_type=jnp.float32)                # (rows, F)
        for j in range(1, k):                                            # static unroll over taps
            xj = x_ref[pl.ds(j, rows), :]                                # (rows, C_IN)
            acc = acc + jnp.dot(xj, w_ref[j],
                                preferred_element_type=jnp.float32)

        # MaxPool1d(kernel_size=l_out, stride=1) over a length-l_out conv output yields exactly
        # one window == global max over time. Bias is added after the max (hoisted).
        per_sample = []
        for b in range(batch):             # cheap epilogue; the matmuls above are batch-folded
            seg = acc[b * lp8: b * lp8 + l_out, :]                       # valid rows of sample b
            per_sample.append(jnp.max(seg, axis=0, keepdims=True))       # (1, F)
        feats.append(jnp.concatenate(per_sample, axis=0) + b_ref[...])   # (batch, F)

    h = jnp.concatenate(feats, axis=1)                                   # (batch, nb*F)

    for i in range(fc_depth):
        fw = fc_refs[2 * i][...]
        fb = fc_refs[2 * i + 1][...]
        h = jnp.dot(h, fw, preferred_element_type=jnp.float32) + fb
        h = jnp.maximum(h, 0.0)

    fw = fc_refs[2 * fc_depth][...]
    fb = fc_refs[2 * fc_depth + 1][...]
    h = jnp.dot(h, fw, preferred_element_type=jnp.float32) + fb
    # sigmoid(x) = 1 / (1 + exp(-x)); exp on the EUP, approximate reciprocal stays off the VALU.
    out_ref[...] = pl.reciprocal(1.0 + jnp.exp(-h), approx=True).astype(out_ref.dtype)


# ------------------------------ wrapper (glue) ------------------------------


def deepgoplus_forward(x, kparams):
    """x: (B, MAXLEN, 21) channels-last (the tensor the PyTorch module permutes to NCL)."""
    kernels = kparams["kernels"]
    fc_depth = kparams["fc_depth"]
    nb_filters = kparams["nb_filters"]
    nb_classes = kparams["nb_classes"]
    B, L, C = x.shape
    assert C == C_IN and L == MAXLEN

    lp = L + 2                                   # Conv1d padding=1 on the time axis
    lp8 = _round_up(lp, 8)                       # per-sample row stride (sublane aligned)
    max_k = max(kernels)
    rows = B * lp8
    total_rows = _round_up(rows + max_k, 8)      # slack so shifted ref-slices stay in bounds

    # conv padding + alignment padding + flatten: cheap, no K-times im2col inflation in HBM.
    x_pad = jnp.pad(x, ((0, 0), (1, 1 + lp8 - lp), (0, 0)))              # (B, lp8, C), zeros
    x_flat = jnp.pad(x_pad.reshape(B * lp8, C), ((0, total_rows - rows), (0, 0)))

    kern = functools.partial(
        _fused_forward_kernel,
        kernels=tuple(kernels), nb_filters=nb_filters, fc_depth=fc_depth,
        batch=B, lp8=lp8, maxlen=L)

    args = [x_flat]
    for (w, b) in kparams["convs"]:
        args += [w, b]
    for (w, b) in kparams["fcs"] + [kparams["fc_final"]]:
        args += [w, b]

    vmem = pl.BlockSpec(memory_space=pltpu.MemorySpace.VMEM)
    return pl.pallas_call(
        kern,
        out_shape=jax.ShapeDtypeStruct((B, nb_classes), jnp.float32),
        in_specs=[vmem] * len(args),
        out_specs=vmem,
    )(*args)


# ------------------------------ parameters ------------------------------


def init_deepgoplus_params(key, nb_classes, params):
    """Deterministic synthetic parameters in PyTorch layout (Conv1d: (F,C,k), Linear: (out,in))."""
    kernels = list(range(8, params["max_kernel"], 8))
    F_out = params["nb_filters"]
    weights = {"convs": [], "fcs": []}
    keys = iter(jax.random.split(key, 2 * len(kernels) + 2 * (params["fc_depth"] + 1)))
    for k in kernels:
        wk = jax.random.normal(next(keys), (F_out, C_IN, k), jnp.float32) / np.sqrt(C_IN * k)
        bk = jax.random.normal(next(keys), (F_out,), jnp.float32) * 0.01
        weights["convs"].append((wk, bk))
    d_in = len(kernels) * F_out
    for _ in range(params["fc_depth"]):
        wf = jax.random.normal(next(keys), (nb_classes, d_in), jnp.float32) / np.sqrt(d_in)
        bf = jax.random.normal(next(keys), (nb_classes,), jnp.float32) * 0.01
        weights["fcs"].append((wf, bf))
        d_in = nb_classes
    wf = jax.random.normal(next(keys), (nb_classes, d_in), jnp.float32) / np.sqrt(d_in)
    bf = jax.random.normal(next(keys), (nb_classes,), jnp.float32) * 0.01
    weights["fc_final"] = (wf, bf)
    return weights, kernels


def prepare_kernel_params(weights, kernels, nb_classes, params):
    """One-time layout prep (NOT in the per-forward path):
    conv (F, C, k) -> per-tap (k, C, F); Linear (out, in) -> (in, out); biases -> (1, D)."""
    return {
        "kernels": list(kernels),
        "fc_depth": params["fc_depth"],
        "nb_filters": params["nb_filters"],
        "nb_classes": nb_classes,
        "convs": [(jnp.transpose(w, (2, 1, 0)), b.reshape(1, -1))
                  for (w, b) in weights["convs"]],
        "fcs": [(w.T, b.reshape(1, -1)) for (w, b) in weights["fcs"]],
        "fc_final": (weights["fc_final"][0].T, weights["fc_final"][1].reshape(1, -1)),
    }


# ------------------------------ pure-JAX reference ------------------------------


def deepgoplus_reference(x, weights, kernels, fc_depth):
    """Pure-JAX reference implementing the same semantics as the PyTorch module."""
    B, L, C = x.shape
    x_pad = jnp.pad(x, ((0, 0), (1, 1), (0, 0)))
    feats = []
    for (w, b), k in zip(weights["convs"], kernels):
        F_out = w.shape[0]
        L_out = L + 2 - k + 1
        idx = jnp.arange(L_out)[:, None] + jnp.arange(k)[None, :]
        patches = x_pad[:, idx, :].reshape(B, L_out, k * C)
        w_mat = jnp.transpose(w, (2, 1, 0)).reshape(k * C, F_out)
        conv = jnp.einsum("blk,kf->blf", patches, w_mat,
                          precision=jax.lax.Precision.HIGHEST) + b[None, None, :]
        feats.append(jnp.max(conv, axis=1))
    out = jnp.concatenate(feats, axis=1)
    for i in range(fc_depth):
        w, b = weights["fcs"][i]
        out = jnp.maximum(out @ w.T + b, 0.0)
    w, b = weights["fc_final"]
    out = jax.nn.sigmoid(out @ w.T + b)
    return out


if __name__ == "__main__":
    nb_classes = 12
    params = {"max_kernel": 24, "nb_filters": 16, "fc_depth": 2}   # kernels -> [8, 16]
    B = 2

    key = jax.random.PRNGKey(0)
    k_w, k_x = jax.random.split(key)
    weights, kernels = init_deepgoplus_params(k_w, nb_classes, params)
    kparams = prepare_kernel_params(weights, kernels, nb_classes, params)  # one-time layout prep
    x = jax.random.normal(k_x, (B, MAXLEN, C_IN), jnp.float32)  # stand-in for AA one-hot input

    out = deepgoplus_forward(x, kparams)
    out = jax.block_until_ready(out)

    ref = deepgoplus_reference(x, weights, kernels, params["fc_depth"])
    assert out.shape == (B, nb_classes)
    # 1e-2 tolerance covers the MXU's default f32 (bf16-pass) matmul precision and the approx
    # EUP reciprocal used in the in-kernel sigmoid, versus the HIGHEST-precision reference.
    np.testing.assert_allclose(np.asarray(out), np.asarray(ref), atol=1e-2, rtol=1e-2)
    print("KERNEL_OK")
</pallas_src>

<mosaic_0001>
module attributes {stable_mosaic.version = 11 : i64} {
  func.func @_fused_forward_kernel(%arg0: memref<96x21xf32, #tpu.memory_space<vmem>>, %arg1: memref<8x21x16xf32, #tpu.memory_space<vmem>>, %arg2: memref<1x16xf32, #tpu.memory_space<vmem>>, %arg3: memref<16x21x16xf32, #tpu.memory_space<vmem>>, %arg4: memref<1x16xf32, #tpu.memory_space<vmem>>, %arg5: memref<32x12xf32, #tpu.memory_space<vmem>>, %arg6: memref<1x12xf32, #tpu.memory_space<vmem>>, %arg7: memref<12x12xf32, #tpu.memory_space<vmem>>, %arg8: memref<1x12xf32, #tpu.memory_space<vmem>>, %arg9: memref<12x12xf32, #tpu.memory_space<vmem>>, %arg10: memref<1x12xf32, #tpu.memory_space<vmem>>, %arg11: memref<2x12xf32, #tpu.memory_space<vmem>>) attributes {dimension_semantics = [], scalar_prefetch = 0 : i64, scratch_operands = 0 : i64, tpu.core_type = #tpu.core_type<tc>} {
    %c0 = arith.constant 0 : index
    %c0_0 = arith.constant 0 : index
    %0 = vector.load %arg0[%c0, %c0_0] : memref<96x21xf32, #tpu.memory_space<vmem>>, vector<80x21xf32>
    %c0_1 = arith.constant 0 : index
    %c0_2 = arith.constant 0 : index
    %c0_3 = arith.constant 0 : index
    %1 = vector.load %arg1[%c0_1, %c0_2, %c0_3] : memref<8x21x16xf32, #tpu.memory_space<vmem>>, vector<1x21x16xf32>
    %2 = vector.shape_cast %1 : vector<1x21x16xf32> to vector<21x16xf32>
    %cst = arith.constant dense<0.000000e+00> : vector<80x16xf32>
    %3 = tpu.matmul %0, %2, %cst {dimension_numbers = #tpu.dot_dimension_numbers<[1], [0], [0], [1], [0, 0, 1, 1], [], []>} : vector<80x21xf32>, vector<21x16xf32>, vector<80x16xf32> -> vector<80x16xf32>
    %c1 = arith.constant 1 : index
    %c0_4 = arith.constant 0 : index
    %4 = vector.load %arg0[%c1, %c0_4] : memref<96x21xf32, #tpu.memory_space<vmem>>, vector<80x21xf32>
    %c1_5 = arith.constant 1 : index
    %c0_6 = arith.constant 0 : index
    %c0_7 = arith.constant 0 : index
    %5 = vector.load %arg1[%c1_5, %c0_6, %c0_7] : memref<8x21x16xf32, #tpu.memory_space<vmem>>, vector<1x21x16xf32>
    %6 = vector.shape_cast %5 : vector<1x21x16xf32> to vector<21x16xf32>
    %cst_8 = arith.constant dense<0.000000e+00> : vector<80x16xf32>
    %7 = tpu.matmul %4, %6, %cst_8 {dimension_numbers = #tpu.dot_dimension_numbers<[1], [0], [0], [1], [0, 0, 1, 1], [], []>} : vector<80x21xf32>, vector<21x16xf32>, vector<80x16xf32> -> vector<80x16xf32>
    %8 = arith.addf %3, %7 : vector<80x16xf32>
    %c2 = arith.constant 2 : index
    %c0_9 = arith.constant 0 : index
    %9 = vector.load %arg0[%c2, %c0_9] : memref<96x21xf32, #tpu.memory_space<vmem>>, vector<80x21xf32>
    %c2_10 = arith.constant 2 : index
    %c0_11 = arith.constant 0 : index
    %c0_12 = arith.constant 0 : index
    %10 = vector.load %arg1[%c2_10, %c0_11, %c0_12] : memref<8x21x16xf32, #tpu.memory_space<vmem>>, vector<1x21x16xf32>
    %11 = vector.shape_cast %10 : vector<1x21x16xf32> to vector<21x16xf32>
    %cst_13 = arith.constant dense<0.000000e+00> : vector<80x16xf32>
    %12 = tpu.matmul %9, %11, %cst_13 {dimension_numbers = #tpu.dot_dimension_numbers<[1], [0], [0], [1], [0, 0, 1, 1], [], []>} : vector<80x21xf32>, vector<21x16xf32>, vector<80x16xf32> -> vector<80x16xf32>
    %13 = arith.addf %8, %12 : vector<80x16xf32>
    %c3 = arith.constant 3 : index
    %c0_14 = arith.constant 0 : index
    %14 = vector.load %arg0[%c3, %c0_14] : memref<96x21xf32, #tpu.memory_space<vmem>>, vector<80x21xf32>
    %c3_15 = arith.constant 3 : index
    %c0_16 = arith.constant 0 : index
    %c0_17 = arith.constant 0 : index
    %15 = vector.load %arg1[%c3_15, %c0_16, %c0_17] : memref<8x21x16xf32, #tpu.memory_space<vmem>>, vector<1x21x16xf32>
    %16 = vector.shape_cast %15 : vector<1x21x16xf32> to vector<21x16xf32>
    %cst_18 = arith.constant dense<0.000000e+00> : vector<80x16xf32>
    %17 = tpu.matmul %14, %16, %cst_18 {dimension_numbers = #tpu.dot_dimension_numbers<[1], [0], [0], [1], [0, 0, 1, 1], [], []>} : vector<80x21xf32>, vector<21x16xf32>, vector<80x16xf32> -> vector<80x16xf32>
    %18 = arith.addf %13, %17 : vector<80x16xf32>
    %c4 = arith.constant 4 : index
    %c0_19 = arith.constant 0 : index
    %19 = vector.load %arg0[%c4, %c0_19] : memref<96x21xf32, #tpu.memory_space<vmem>>, vector<80x21xf32>
    %c4_20 = arith.constant 4 : index
    %c0_21 = arith.constant 0 : index
    %c0_22 = arith.constant 0 : index
    %20 = vector.load %arg1[%c4_20, %c0_21, %c0_22] : memref<8x21x16xf32, #tpu.memory_space<vmem>>, vector<1x21x16xf32>
    %21 = vector.shape_cast %20 : vector<1x21x16xf32> to vector<21x16xf32>
    %cst_23 = arith.constant dense<0.000000e+00> : vector<80x16xf32>
    %22 = tpu.matmul %19, %21, %cst_23 {dimension_numbers = #tpu.dot_dimension_numbers<[1], [0], [0], [1], [0, 0, 1, 1], [], []>} : vector<80x21xf32>, vector<21x16xf32>, vector<80x16xf32> -> vector<80x16xf32>
    %23 = arith.addf %18, %22 : vector<80x16xf32>
    %c5 = arith.constant 5 : index
    %c0_24 = arith.constant 0 : index
    %24 = vector.load %arg0[%c5, %c0_24] : memref<96x21xf32, #tpu.memory_space<vmem>>, vector<80x21xf32>
    %c5_25 = arith.constant 5 : index
    %c0_26 = arith.constant 0 : index
    %c0_27 = arith.constant 0 : index
    %25 = vector.load %arg1[%c5_25, %c0_26, %c0_27] : memref<8x21x16xf32, #tpu.memory_space<vmem>>, vector<1x21x16xf32>
    %26 = vector.shape_cast %25 : vector<1x21x16xf32> to vector<21x16xf32>
    %cst_28 = arith.constant dense<0.000000e+00> : vector<80x16xf32>
    %27 = tpu.matmul %24, %26, %cst_28 {dimension_numbers = #tpu.dot_dimension_numbers<[1], [0], [0], [1], [0, 0, 1, 1], [], []>} : vector<80x21xf32>, vector<21x16xf32>, vector<80x16xf32> -> vector<80x16xf32>
    %28 = arith.addf %23, %27 : vector<80x16xf32>
    %c6 = arith.constant 6 : index
    %c0_29 = arith.constant 0 : index
    %29 = vector.load %arg0[%c6, %c0_29] : memref<96x21xf32, #tpu.memory_space<vmem>>, vector<80x21xf32>
    %c6_30 = arith.constant 6 : index
    %c0_31 = arith.constant 0 : index
    %c0_32 = arith.constant 0 : index
    %30 = vector.load %arg1[%c6_30, %c0_31, %c0_32] : memref<8x21x16xf32, #tpu.memory_space<vmem>>, vector<1x21x16xf32>
    %31 = vector.shape_cast %30 : vector<1x21x16xf32> to vector<21x16xf32>
    %cst_33 = arith.constant dense<0.000000e+00> : vector<80x16xf32>
    %32 = tpu.matmul %29, %31, %cst_33 {dimension_numbers = #tpu.dot_dimension_numbers<[1], [0], [0], [1], [0, 0, 1, 1], [], []>} : vector<80x21xf32>, vector<21x16xf32>, vector<80x16xf32> -> vector<80x16xf32>
    %33 = arith.addf %28, %32 : vector<80x16xf32>
    %c7 = arith.constant 7 : index
    %c0_34 = arith.constant 0 : index
    %34 = vector.load %arg0[%c7, %c0_34] : memref<96x21xf32, #tpu.memory_space<vmem>>, vector<80x21xf32>
    %c7_35 = arith.constant 7 : index
    %c0_36 = arith.constant 0 : index
    %c0_37 = arith.constant 0 : index
    %35 = vector.load %arg1[%c7_35, %c0_36, %c0_37] : memref<8x21x16xf32, #tpu.memory_space<vmem>>, vector<1x21x16xf32>
    %36 = vector.shape_cast %35 : vector<1x21x16xf32> to vector<21x16xf32>
    %cst_38 = arith.constant dense<0.000000e+00> : vector<80x16xf32>
    %37 = tpu.matmul %34, %36, %cst_38 {dimension_numbers = #tpu.dot_dimension_numbers<[1], [0], [0], [1], [0, 0, 1, 1], [], []>} : vector<80x21xf32>, vector<21x16xf32>, vector<80x16xf32> -> vector<80x16xf32>
    %38 = arith.addf %33, %37 : vector<80x16xf32>
    %39 = vector.extract_strided_slice %38 {offsets = [0, 0], sizes = [27, 16], strides = [1, 1]} : vector<80x16xf32> to vector<27x16xf32>
    %cst_39 = arith.constant dense<0xFF800000> : vector<16xf32>
    %40 = vector.multi_reduction <maximumf>, %39, %cst_39 [0] : vector<27x16xf32> to vector<16xf32>
    %41 = vector.shape_cast %40 : vector<16xf32> to vector<1x16xf32>
    %42 = vector.extract_strided_slice %38 {offsets = [40, 0], sizes = [27, 16], strides = [1, 1]} : vector<80x16xf32> to vector<27x16xf32>
    %cst_40 = arith.constant dense<0xFF800000> : vector<16xf32>
    %43 = vector.multi_reduction <maximumf>, %42, %cst_40 [0] : vector<27x16xf32> to vector<16xf32>
    %44 = vector.shape_cast %43 : vector<16xf32> to vector<1x16xf32>
    %45 = tpu.concatenate %41, %44 in 0 : vector<1x16xf32>, vector<1x16xf32> -> vector<2x16xf32>
    %c0_41 = arith.constant 0 : index
    %c0_42 = arith.constant 0 : index
    %46 = vector.load %arg2[%c0_41, %c0_42] : memref<1x16xf32, #tpu.memory_space<vmem>>, vector<1x16xf32>
    %47 = vector.broadcast %46 : vector<1x16xf32> to vector<2x16xf32>
    %48 = arith.addf %45, %47 : vector<2x16xf32>
    %c0_43 = arith.constant 0 : index
    %c0_44 = arith.constant 0 : index
    %49 = vector.load %arg0[%c0_43, %c0_44] : memref<96x21xf32, #tpu.memory_space<vmem>>, vector<80x21xf32>
    %c0_45 = arith.constant 0 : index
    %c0_46 = arith.constant 0 : index
    %c0_47 = arith.constant 0 : index
    %50 = vector.load %arg3[%c0_45, %c0_46, %c0_47] : memref<16x21x16xf32, #tpu.memory_space<vmem>>, vector<1x21x16xf32>
    %51 = vector.shape_cast %50 : vector<1x21x16xf32> to vector<21x16xf32>
    %cst_48 = arith.constant dense<0.000000e+00> : vector<80x16xf32>
    %52 = tpu.matmul %49, %51, %cst_48 {dimension_numbers = #tpu.dot_dimension_numbers<[1], [0], [0], [1], [0, 0, 1, 1], [], []>} : vector<80x21xf32>, vector<21x16xf32>, vector<80x16xf32> -> vector<80x16xf32>
    %c1_49 = arith.constant 1 : index
    %c0_50 = arith.constant 0 : index
    %53 = vector.load %arg0[%c1_49, %c0_50] : memref<96x21xf32, #tpu.memory_space<vmem>>, vector<80x21xf32>
    %c1_51 = arith.constant 1 : index
    %c0_52 = arith.constant 0 : index
    %c0_53 = arith.constant 0 : index
    %54 = vector.load %arg3[%c1_51, %c0_52, %c0_53] : memref<16x21x16xf32, #tpu.memory_space<vmem>>, vector<1x21x16xf32>
    %55 = vector.shape_cast %54 : vector<1x21x16xf32> to vector<21x16xf32>
    %cst_54 = arith.constant dense<0.000000e+00> : vector<80x16xf32>
    %56 = tpu.matmul %53, %55, %cst_54 {dimension_numbers = #tpu.dot_dimension_numbers<[1], [0], [0], [1], [0, 0, 1, 1], [], []>} : vector<80x21xf32>, vector<21x16xf32>, vector<80x16xf32> -> vector<80x16xf32>
    %57 = arith.addf %52, %56 : vector<80x16xf32>
    %c2_55 = arith.constant 2 : index
    %c0_56 = arith.constant 0 : index
    %58 = vector.load %arg0[%c2_55, %c0_56] : memref<96x21xf32, #tpu.memory_space<vmem>>, vector<80x21xf32>
    %c2_57 = arith.constant 2 : index
    %c0_58 = arith.constant 0 : index
    %c0_59 = arith.constant 0 : index
    %59 = vector.load %arg3[%c2_57, %c0_58, %c0_59] : memref<16x21x16xf32, #tpu.memory_space<vmem>>, vector<1x21x16xf32>
    %60 = vector.shape_cast %59 : vector<1x21x16xf32> to vector<21x16xf32>
    %cst_60 = arith.constant dense<0.000000e+00> : vector<80x16xf32>
    %61 = tpu.matmul %58, %60, %cst_60 {dimension_numbers = #tpu.dot_dimension_numbers<[1], [0], [0], [1], [0, 0, 1, 1], [], []>} : vector<80x21xf32>, vector<21x16xf32>, vector<80x16xf32> -> vector<80x16xf32>
    %62 = arith.addf %57, %61 : vector<80x16xf32>
    %c3_61 = arith.constant 3 : index
    %c0_62 = arith.constant 0 : index
    %63 = vector.load %arg0[%c3_61, %c0_62] : memref<96x21xf32, #tpu.memory_space<vmem>>, vector<80x21xf32>
    %c3_63 = arith.constant 3 : index
    %c0_64 = arith.constant 0 : index
    %c0_65 = arith.constant 0 : index
    %64 = vector.load %arg3[%c3_63, %c0_64, %c0_65] : memref<16x21x16xf32, #tpu.memory_space<vmem>>, vector<1x21x16xf32>
    %65 = vector.shape_cast %64 : vector<1x21x16xf32> to vector<21x16xf32>
    %cst_66 = arith.constant dense<0.000000e+00> : vector<80x16xf32>
    %66 = tpu.matmul %63, %65, %cst_66 {dimension_numbers = #tpu.dot_dimension_numbers<[1], [0], [0], [1], [0, 0, 1, 1], [], []>} : vector<80x21xf32>, vector<21x16xf32>, vector<80x16xf32> -> vector<80x16xf32>
    %67 = arith.addf %62, %66 : vector<80x16xf32>
    %c4_67 = arith.constant 4 : index
    %c0_68 = arith.constant 0 : index
    %68 = vector.load %arg0[%c4_67, %c0_68] : memref<96x21xf32, #tpu.memory_space<vmem>>, vector<80x21xf32>
    %c4_69 = arith.constant 4 : index
    %c0_70 = arith.constant 0 : index
    %c0_71 = arith.constant 0 : index
    %69 = vector.load %arg3[%c4_69, %c0_70, %c0_71] : memref<16x21x16xf32, #tpu.memory_space<vmem>>, vector<1x21x16xf32>
    %70 = vector.shape_cast %69 : vector<1x21x16xf32> to vector<21x16xf32>
    %cst_72 = arith.constant dense<0.000000e+00> : vector<80x16xf32>
    %71 = tpu.matmul %68, %70, %cst_72 {dimension_numbers = #tpu.dot_dimension_numbers<[1], [0], [0], [1], [0, 0, 1, 1], [], []>} : vector<80x21xf32>, vector<21x16xf32>, vector<80x16xf32> -> vector<80x16xf32>
    %72 = arith.addf %67, %71 : vector<80x16xf32>
    %c5_73 = arith.constant 5 : index
    %c0_74 = arith.constant 0 : index
    %73 = vector.load %arg0[%c5_73, %c0_74] : memref<96x21xf32, #tpu.memory_space<vmem>>, vector<80x21xf32>
    %c5_75 = arith.constant 5 : index
    %c0_76 = arith.constant 0 : index
    %c0_77 = arith.constant 0 : index
    %74 = vector.load %arg3[%c5_75, %c0_76, %c0_77] : memref<16x21x16xf32, #tpu.memory_space<vmem>>, vector<1x21x16xf32>
    %75 = vector.shape_cast %74 : vector<1x21x16xf32> to vector<21x16xf32>
    %cst_78 = arith.constant dense<0.000000e+00> : vector<80x16xf32>
    %76 = tpu.matmul %73, %75, %cst_78 {dimension_numbers = #tpu.dot_dimension_numbers<[1], [0], [0], [1], [0, 0, 1, 1], [], []>} : vector<80x21xf32>, vector<21x16xf32>, vector<80x16xf32> -> vector<80x16xf32>
    %77 = arith.addf %72, %76 : vector<80x16xf32>
    %c6_79 = arith.constant 6 : index
    %c0_80 = arith.constant 0 : index
    %78 = vector.load %arg0[%c6_79, %c0_80] : memref<96x21xf32, #tpu.memory_space<vmem>>, vector<80x21xf32>
    %c6_81 = arith.constant 6 : index
    %c0_82 = arith.constant 0 : index
    %c0_83 = arith.constant 0 : index
    %79 = vector.load %arg3[%c6_81, %c0_82, %c0_83] : memref<16x21x16xf32, #tpu.memory_space<vmem>>, vector<1x21x16xf32>
    %80 = vector.shape_cast %79 : vector<1x21x16xf32> to vector<21x16xf32>
    %cst_84 = arith.constant dense<0.000000e+00> : vector<80x16xf32>
    %81 = tpu.matmul %78, %80, %cst_84 {dimension_numbers = #tpu.dot_dimension_numbers<[1], [0], [0], [1], [0, 0, 1, 1], [], []>} : vector<80x21xf32>, vector<21x16xf32>, vector<80x16xf32> -> vector<80x16xf32>
    %82 = arith.addf %77, %81 : vector<80x16xf32>
    %c7_85 = arith.constant 7 : index
    %c0_86 = arith.constant 0 : index
    %83 = vector.load %arg0[%c7_85, %c0_86] : memref<96x21xf32, #tpu.memory_space<vmem>>, vector<80x21xf32>
    %c7_87 = arith.constant 7 : index
    %c0_88 = arith.constant 0 : index
    %c0_89 = arith.constant 0 : index
    %84 = vector.load %arg3[%c7_87, %c0_88, %c0_89] : memref<16x21x16xf32, #tpu.memory_space<vmem>>, vector<1x21x16xf32>
    %85 = vector.shape_cast %84 : vector<1x21x16xf32> to vector<21x16xf32>
    %cst_90 = arith.constant dense<0.000000e+00> : vector<80x16xf32>
    %86 = tpu.matmul %83, %85, %cst_90 {dimension_numbers = #tpu.dot_dimension_numbers<[1], [0], [0], [1], [0, 0, 1, 1], [], []>} : vector<80x21xf32>, vector<21x16xf32>, vector<80x16xf32> -> vector<80x16xf32>
    %87 = arith.addf %82, %86 : vector<80x16xf32>
    %c8 = arith.constant 8 : index
    %c0_91 = arith.constant 0 : index
    %88 = vector.load %arg0[%c8, %c0_91] : memref<96x21xf32, #tpu.memory_space<vmem>>, vector<80x21xf32>
    %c8_92 = arith.constant 8 : index
    %c0_93 = arith.constant 0 : index
    %c0_94 = arith.constant 0 : index
    %89 = vector.load %arg3[%c8_92, %c0_93, %c0_94] : memref<16x21x16xf32, #tpu.memory_space<vmem>>, vector<1x21x16xf32>
    %90 = vector.shape_cast %89 : vector<1x21x16xf32> to vector<21x16xf32>
    %cst_95 = arith.constant dense<0.000000e+00> : vector<80x16xf32>
    %91 = tpu.matmul %88, %90, %cst_95 {dimension_numbers = #tpu.dot_dimension_numbers<[1], [0], [0], [1], [0, 0, 1, 1], [], []>} : vector<80x21xf32>, vector<21x16xf32>, vector<80x16xf32> -> vector<80x16xf32>
    %92 = arith.addf %87, %91 : vector<80x16xf32>
    %c9 = arith.constant 9 : index
    %c0_96 = arith.constant 0 : index
    %93 = vector.load %arg0[%c9, %c0_96] : memref<96x21xf32, #tpu.memory_space<vmem>>, vector<80x21xf32>
    %c9_97 = arith.constant 9 : index
    %c0_98 = arith.constant 0 : index
    %c0_99 = arith.constant 0 : index
    %94 = vector.load %arg3[%c9_97, %c0_98, %c0_99] : memref<16x21x16xf32, #tpu.memory_space<vmem>>, vector<1x21x16xf32>
    %95 = vector.shape_cast %94 : vector<1x21x16xf32> to vector<21x16xf32>
    %cst_100 = arith.constant dense<0.000000e+00> : vector<80x16xf32>
    %96 = tpu.matmul %93, %95, %cst_100 {dimension_numbers = #tpu.dot_dimension_numbers<[1], [0], [0], [1], [0, 0, 1, 1], [], []>} : vector<80x21xf32>, vector<21x16xf32>, vector<80x16xf32> -> vector<80x16xf32>
    %97 = arith.addf %92, %96 : vector<80x16xf32>
    %c10 = arith.constant 10 : index
    %c0_101 = arith.constant 0 : index
    %98 = vector.load %arg0[%c10, %c0_101] : memref<96x21xf32, #tpu.memory_space<vmem>>, vector<80x21xf32>
    %c10_102 = arith.constant 10 : index
    %c0_103 = arith.constant 0 : index
    %c0_104 = arith.constant 0 : index
    %99 = vector.load %arg3[%c10_102, %c0_103, %c0_104] : memref<16x21x16xf32, #tpu.memory_space<vmem>>, vector<1x21x16xf32>
    %100 = vector.shape_cast %99 : vector<1x21x16xf32> to vector<21x16xf32>
    %cst_105 = arith.constant dense<0.000000e+00> : vector<80x16xf32>
    %101 = tpu.matmul %98, %100, %cst_105 {dimension_numbers = #tpu.dot_dimension_numbers<[1], [0], [0], [1], [0, 0, 1, 1], [], []>} : vector<80x21xf32>, vector<21x16xf32>, vector<80x16xf32> -> vector<80x16xf32>
    %102 = arith.addf %97, %101 : vector<80x16xf32>
    %c11 = arith.constant 11 : index
    %c0_106 = arith.constant 0 : index
    %103 = vector.load %arg0[%c11, %c0_106] : memref<96x21xf32, #tpu.memory_space<vmem>>, vector<80x21xf32>
    %c11_107 = arith.constant 11 : index
    %c0_108 = arith.constant 0 : index
    %c0_109 = arith.constant 0 : index
    %104 = vector.load %arg3[%c11_107, %c0_108, %c0_109] : memref<16x21x16xf32, #tpu.memory_space<vmem>>, vector<1x21x16xf32>
    %105 = vector.shape_cast %104 : vector<1x21x16xf32> to vector<21x16xf32>
    %cst_110 = arith.constant dense<0.000000e+00> : vector<80x16xf32>
    %106 = tpu.matmul %103, %105, %cst_110 {dimension_numbers = #tpu.dot_dimension_numbers<[1], [0], [0], [1], [0, 0, 1, 1], [], []>} : vector<80x21xf32>, vector<21x16xf32>, vector<80x16xf32> -> vector<80x16xf32>
    %107 = arith.addf %102, %106 : vector<80x16xf32>
    %c12 = arith.constant 12 : index
    %c0_111 = arith.constant 0 : index
    %108 = vector.load %arg0[%c12, %c0_111] : memref<96x21xf32, #tpu.memory_space<vmem>>, vector<80x21xf32>
    %c12_112 = arith.constant 12 : index
    %c0_113 = arith.constant 0 : index
    %c0_114 = arith.constant 0 : index
    %109 = vector.load %arg3[%c12_112, %c0_113, %c0_114] : memref<16x21x16xf32, #tpu.memory_space<vmem>>, vector<1x21x16xf32>
    %110 = vector.shape_cast %109 : vector<1x21x16xf32> to vector<21x16xf32>
    %cst_115 = arith.constant dense<0.000000e+00> : vector<80x16xf32>
    %111 = tpu.matmul %108, %110, %cst_115 {dimension_numbers = #tpu.dot_dimension_numbers<[1], [0], [0], [1], [0, 0, 1, 1], [], []>} : vector<80x21xf32>, vector<21x16xf32>, vector<80x16xf32> -> vector<80x16xf32>
    %112 = arith.addf %107, %111 : vector<80x16xf32>
    %c13 = arith.constant 13 : index
    %c0_116 = arith.constant 0 : index
    %113 = vector.load %arg0[%c13, %c0_116] : memref<96x21xf32, #tpu.memory_space<vmem>>, vector<80x21xf32>
    %c13_117 = arith.constant 13 : index
    %c0_118 = arith.constant 0 : index
    %c0_119 = arith.constant 0 : index
    %114 = vector.load %arg3[%c13_117, %c0_118, %c0_119] : memref<16x21x16xf32, #tpu.memory_space<vmem>>, vector<1x21x16xf32>
    %115 = vector.shape_cast %114 : vector<1x21x16xf32> to vector<21x16xf32>
    %cst_120 = arith.constant dense<0.000000e+00> : vector<80x16xf32>
    %116 = tpu.matmul %113, %115, %cst_120 {dimension_numbers = #tpu.dot_dimension_numbers<[1], [0], [0], [1], [0, 0, 1, 1], [], []>} : vector<80x21xf32>, vector<21x16xf32>, vector<80x16xf32> -> vector<80x16xf32>
    %117 = arith.addf %112, %116 : vector<80x16xf32>
    %c14 = arith.constant 14 : index
    %c0_121 = arith.constant 0 : index
    %118 = vector.load %arg0[%c14, %c0_121] : memref<96x21xf32, #tpu.memory_space<vmem>>, vector<80x21xf32>
    %c14_122 = arith.constant 14 : index
    %c0_123 = arith.constant 0 : index
    %c0_124 = arith.constant 0 : index
    %119 = vector.load %arg3[%c14_122, %c0_123, %c0_124] : memref<16x21x16xf32, #tpu.memory_space<vmem>>, vector<1x21x16xf32>
    %120 = vector.shape_cast %119 : vector<1x21x16xf32> to vector<21x16xf32>
    %cst_125 = arith.constant dense<0.000000e+00> : vector<80x16xf32>
    %121 = tpu.matmul %118, %120, %cst_125 {dimension_numbers = #tpu.dot_dimension_numbers<[1], [0], [0], [1], [0, 0, 1, 1], [], []>} : vector<80x21xf32>, vector<21x16xf32>, vector<80x16xf32> -> vector<80x16xf32>
    %122 = arith.addf %117, %121 : vector<80x16xf32>
    %c15 = arith.constant 15 : index
    %c0_126 = arith.constant 0 : index
    %123 = vector.load %arg0[%c15, %c0_126] : memref<96x21xf32, #tpu.memory_space<vmem>>, vector<80x21xf32>
    %c15_127 = arith.constant 15 : index
    %c0_128 = arith.constant 0 : index
    %c0_129 = arith.constant 0 : index
    %124 = vector.load %arg3[%c15_127, %c0_128, %c0_129] : memref<16x21x16xf32, #tpu.memory_space<vmem>>, vector<1x21x16xf32>
    %125 = vector.shape_cast %124 : vector<1x21x16xf32> to vector<21x16xf32>
    %cst_130 = arith.constant dense<0.000000e+00> : vector<80x16xf32>
    %126 = tpu.matmul %123, %125, %cst_130 {dimension_numbers = #tpu.dot_dimension_numbers<[1], [0], [0], [1], [0, 0, 1, 1], [], []>} : vector<80x21xf32>, vector<21x16xf32>, vector<80x16xf32> -> vector<80x16xf32>
    %127 = arith.addf %122, %126 : vector<80x16xf32>
    %128 = vector.extract_strided_slice %127 {offsets = [0, 0], sizes = [19, 16], strides = [1, 1]} : vector<80x16xf32> to vector<19x16xf32>
    %cst_131 = arith.constant dense<0xFF800000> : vector<16xf32>
    %129 = vector.multi_reduction <maximumf>, %128, %cst_131 [0] : vector<19x16xf32> to vector<16xf32>
    %130 = vector.shape_cast %129 : vector<16xf32> to vector<1x16xf32>
    %131 = vector.extract_strided_slice %127 {offsets = [40, 0], sizes = [19, 16], strides = [1, 1]} : vector<80x16xf32> to vector<19x16xf32>
    %cst_132 = arith.constant dense<0xFF800000> : vector<16xf32>
    %132 = vector.multi_reduction <maximumf>, %131, %cst_132 [0] : vector<19x16xf32> to vector<16xf32>
    %133 = vector.shape_cast %132 : vector<16xf32> to vector<1x16xf32>
    %134 = tpu.concatenate %130, %133 in 0 : vector<1x16xf32>, vector<1x16xf32> -> vector<2x16xf32>
    %c0_133 = arith.constant 0 : index
    %c0_134 = arith.constant 0 : index
    %135 = vector.load %arg4[%c0_133, %c0_134] : memref<1x16xf32, #tpu.memory_space<vmem>>, vector<1x16xf32>
    %136 = vector.broadcast %135 : vector<1x16xf32> to vector<2x16xf32>
    %137 = arith.addf %134, %136 : vector<2x16xf32>
    %138 = tpu.concatenate %48, %137 in 1 : vector<2x16xf32>, vector<2x16xf32> -> vector<2x32xf32>
    %c0_135 = arith.constant 0 : index
    %c0_136 = arith.constant 0 : index
    %139 = vector.load %arg5[%c0_135, %c0_136] : memref<32x12xf32, #tpu.memory_space<vmem>>, vector<32x12xf32>
    %c0_137 = arith.constant 0 : index
    %c0_138 = arith.constant 0 : index
    %140 = vector.load %arg6[%c0_137, %c0_138] : memref<1x12xf32, #tpu.memory_space<vmem>>, vector<1x12xf32>
    %cst_139 = arith.constant dense<0.000000e+00> : vector<2x12xf32>
    %141 = tpu.matmul %138, %139, %cst_139 {dimension_numbers = #tpu.dot_dimension_numbers<[1], [0], [0], [1], [0, 0, 1, 1], [], []>} : vector<2x32xf32>, vector<32x12xf32>, vector<2x12xf32> -> vector<2x12xf32>
    %142 = vector.broadcast %140 : vector<1x12xf32> to vector<2x12xf32>
    %143 = arith.addf %141, %142 : vector<2x12xf32>
    %cst_140 = arith.constant 0.000000e+00 : f32
    %144 = vector.broadcast %cst_140 : f32 to vector<2x12xf32>
    %145 = arith.maximumf %143, %144 : vector<2x12xf32>
    %c0_141 = arith.constant 0 : index
    %c0_142 = arith.constant 0 : index
    %146 = vector.load %arg7[%c0_141, %c0_142] : memref<12x12xf32, #tpu.memory_space<vmem>>, vector<12x12xf32>
    %c0_143 = arith.constant 0 : index
    %c0_144 = arith.constant 0 : index
    %147 = vector.load %arg8[%c0_143, %c0_144] : memref<1x12xf32, #tpu.memory_space<vmem>>, vector<1x12xf32>
    %cst_145 = arith.constant dense<0.000000e+00> : vector<2x12xf32>
    %148 = tpu.matmul %145, %146, %cst_145 {dimension_numbers = #tpu.dot_dimension_numbers<[1], [0], [0], [1], [0, 0, 1, 1], [], []>} : vector<2x12xf32>, vector<12x12xf32>, vector<2x12xf32> -> vector<2x12xf32>
    %149 = vector.broadcast %147 : vector<1x12xf32> to vector<2x12xf32>
    %150 = arith.addf %148, %149 : vector<2x12xf32>
    %cst_146 = arith.constant 0.000000e+00 : f32
    %151 = vector.broadcast %cst_146 : f32 to vector<2x12xf32>
    %152 = arith.maximumf %150, %151 : vector<2x12xf32>
    %c0_147 = arith.constant 0 : index
    %c0_148 = arith.constant 0 : index
    %153 = vector.load %arg9[%c0_147, %c0_148] : memref<12x12xf32, #tpu.memory_space<vmem>>, vector<12x12xf32>
    %c0_149 = arith.constant 0 : index
    %c0_150 = arith.constant 0 : index
    %154 = vector.load %arg10[%c0_149, %c0_150] : memref<1x12xf32, #tpu.memory_space<vmem>>, vector<1x12xf32>
    %cst_151 = arith.constant dense<0.000000e+00> : vector<2x12xf32>
    %155 = tpu.matmul %152, %153, %cst_151 {dimension_numbers = #tpu.dot_dimension_numbers<[1], [0], [0], [1], [0, 0, 1, 1], [], []>} : vector<2x12xf32>, vector<12x12xf32>, vector<2x12xf32> -> vector<2x12xf32>
    %156 = vector.broadcast %154 : vector<1x12xf32> to vector<2x12xf32>
    %157 = arith.addf %155, %156 : vector<2x12xf32>
    %cst_152 = arith.constant 0.000000e+00 : f32
    %158 = vector.broadcast %cst_152 : f32 to vector<2x12xf32>
    %159 = arith.subf %158, %157 : vector<2x12xf32>
    %160 = math.exp %159 : vector<2x12xf32>
    %cst_153 = arith.constant 1.000000e+00 : f32
    %161 = vector.broadcast %cst_153 : f32 to vector<2x12xf32>
    %162 = arith.addf %161, %160 : vector<2x12xf32>
    %163 = tpu.reciprocal %162 {approx = true} : vector<2x12xf32> -> vector<2x12xf32>
    %c0_154 = arith.constant 0 : index
    %c0_155 = arith.constant 0 : index
    %164 = vector.load %arg11[%c0_154, %c0_155] : memref<2x12xf32, #tpu.memory_space<vmem>>, vector<2x12xf32>
    tpu.vector_store %arg11[%c0_154, %c0_155], %163 {strides = array<i32>} : memref<2x12xf32, #tpu.memory_space<vmem>>, vector<2x12xf32>,
    return
  }
}

</mosaic_0001>

<llo_original>
// kernel: tpu_custom_call.1
$region0: #{tpu_custom_call.1}
  #allocation0 [shape = 'u32[]', space=smem, size = 0x4, offset = 0x4, fixed_abs, tag = 'smem constant byte address 0x4 - core index']
  #allocation1 [shape = 'u32[72,128]{1,0:T(1,128)}', space=vmem, size = 0x9000, scoped, tag = 'internal scratch']
  %s0 = inlined_call_operand.vmem [shape: f32[96,21], index: 0, kind: input, shape index: {}]
  %s1 = inlined_call_operand.vmem [shape: f32[8,21,16], index: 1, kind: input, shape index: {}]
  %s2 = inlined_call_operand.vmem [shape: f32[1,16], index: 2, kind: input, shape index: {}]
  %s3 = inlined_call_operand.vmem [shape: f32[16,21,16], index: 3, kind: input, shape index: {}]
  %s4 = inlined_call_operand.vmem [shape: f32[1,16], index: 4, kind: input, shape index: {}]
  %s5 = inlined_call_operand.vmem [shape: f32[32,12], index: 5, kind: input, shape index: {}]
  %s6 = inlined_call_operand.vmem [shape: f32[1,12], index: 6, kind: input, shape index: {}]
  %s7 = inlined_call_operand.vmem [shape: f32[12,12], index: 7, kind: input, shape index: {}]
  %s8 = inlined_call_operand.vmem [shape: f32[1,12], index: 8, kind: input, shape index: {}]
  %s9 = inlined_call_operand.vmem [shape: f32[12,12], index: 9, kind: input, shape index: {}]
  %s10 = inlined_call_operand.vmem [shape: f32[1,12], index: 10, kind: input, shape index: {}]
  %s11 = inlined_call_operand.hbm [shape: f32[2,12], index: 11, kind: output, shape index: {}]
  %s12 = sld [smem:[#allocation0]]
  $region54: #{tpu_custom_call.1} parent=0
    _
  %s14 = ssub.s32 1, %s12
  %s15 = scalar_select 0, %s14, %s12
  $region1: #{tpu_custom_call.1} parent=0
    #allocation2 [shape = 'u8[1024]{0}', space=vmem, size = 0x400, scoped, tag = 'output window, operand 0, single buffered']
    #allocation3 [shape = 's32[1]{0}', space=sflag, size = 0x4, scoped, tag = 'scoped memory for tpu_custom_call.1']
    %16 = vsyncpa [#allocation3], 0
    // Predicated region
    $region2: #{tpu_custom_call.1} parent=1 // pred_check
      _
    $region3: #{tpu_custom_call.1} parent=1 // pred_check_branch
      %18 = sbr.rel (0) target = $region5
    $region4: #{tpu_custom_call.1} parent=1 // pred_region
      _
    $region5: #{tpu_custom_call.1} parent=1 // pred_fallthru
      _
    // Predicated region
    $region6: #{tpu_custom_call.1} parent=1 // pred_check
      _
    $region7: #{tpu_custom_call.1} parent=1 // pred_check_branch
      %20 = sbr.rel (0) target = $region9
    $region8: #{tpu_custom_call.1} parent=1 // pred_region
      _
    $region9: #{tpu_custom_call.1} parent=1 // pred_fallthru
      _
    // Predicated region
    $region10: #{tpu_custom_call.1} parent=1 // pred_check
      _
    $region11: #{tpu_custom_call.1} parent=1 // pred_check_branch
      %22 = sbr.rel (0) target = $region13
    $region12: #{tpu_custom_call.1} parent=1 // pred_region
      _
    $region13: #{tpu_custom_call.1} parent=1 // pred_fallthru
      _
    // Predicated region
    $region14: #{tpu_custom_call.1} parent=1 // pred_check
      _
    $region15: #{tpu_custom_call.1} parent=1 // pred_check_branch
      %24 = sbr.rel (0) target = $region17
    $region16: #{tpu_custom_call.1} parent=1 // pred_region
      _
    $region17: #{tpu_custom_call.1} parent=1 // pred_fallthru
      _
    // Predicated region
    $region18: #{tpu_custom_call.1} parent=1 // pred_check
      _
    $region19: #{tpu_custom_call.1} parent=1 // pred_check_branch
      %26 = sbr.rel (0) target = $region21
    $region20: #{tpu_custom_call.1} parent=1 // pred_region
      _
    $region21: #{tpu_custom_call.1} parent=1 // pred_fallthru
      _
    // Predicated region
    $region22: #{tpu_custom_call.1} parent=1 // pred_check
      _
    $region23: #{tpu_custom_call.1} parent=1 // pred_check_branch
      %28 = sbr.rel (0) target = $region25
    $region24: #{tpu_custom_call.1} parent=1 // pred_region
      _
    $region25: #{tpu_custom_call.1} parent=1 // pred_fallthru
      _
    // Predicated region
    $region26: #{tpu_custom_call.1} parent=1 // pred_check
      _
    $region27: #{tpu_custom_call.1} parent=1 // pred_check_branch
      %30 = sbr.rel (0) target = $region29
    $region28: #{tpu_custom_call.1} parent=1 // pred_region
      _
    $region29: #{tpu_custom_call.1} parent=1 // pred_fallthru
      _
    // Predicated region
    $region30: #{tpu_custom_call.1} parent=1 // pred_check
      _
    $region31: #{tpu_custom_call.1} parent=1 // pred_check_branch
      %32 = sbr.rel (0) target = $region33
    $region32: #{tpu_custom_call.1} parent=1 // pred_region
      _
    $region33: #{tpu_custom_call.1} parent=1 // pred_fallthru
      _
    // Predicated region
    $region34: #{tpu_custom_call.1} parent=1 // pred_check
      _
    $region35: #{tpu_custom_call.1} parent=1 // pred_check_branch
      %34 = sbr.rel (0) target = $region37
    $region36: #{tpu_custom_call.1} parent=1 // pred_region
      _
    $region37: #{tpu_custom_call.1} parent=1 // pred_fallthru
      _
    // Predicated region
    $region38: #{tpu_custom_call.1} parent=1 // pred_check
      _
    $region39: #{tpu_custom_call.1} parent=1 // pred_check_branch
      %36 = sbr.rel (0) target = $region41
    $region40: #{tpu_custom_call.1} parent=1 // pred_region
      _
    $region41: #{tpu_custom_call.1} parent=1 // pred_fallthru
      _
    // Predicated region
    $region42: #{tpu_custom_call.1} parent=1 // pred_check
      _
    $region43: #{tpu_custom_call.1} parent=1 // pred_check_branch
      %38 = sbr.rel (0) target = $region45
    $region44: #{tpu_custom_call.1} parent=1 // pred_region
      _
    $region45: #{tpu_custom_call.1} parent=1 // pred_fallthru
      _
    %v39 = vld [vmem:[%s0] sm:$0xff]
    %v40 = vld [vmem:[%s0 + $0x8] sm:$0xff]
    %v41 = vld [vmem:[%s0 + $0x10] sm:$0xff]
    %v42 = vld [vmem:[%s0 + $0x18] sm:$0xff]
    %v43 = vld [vmem:[%s0 + $0x20] sm:$0xff]
    %v44 = vld [vmem:[%s0 + $0x28] sm:$0xff]
    %v45 = vld [vmem:[%s0 + $0x30] sm:$0xff]
    %v46 = vld [vmem:[%s0 + $0x38] sm:$0xff]
    %v47 = vld [vmem:[%s0 + $0x40] sm:$0xff]
    %v48 = vld [vmem:[%s0 + $0x48] sm:$0xff]
    %v49 = vld [vmem:[%s1] sm:$0xff]
    %v50 = vld [vmem:[%s1 + $0x8] sm:$0xff]
    %v51 = vld [vmem:[%s1 + $0x10] sm:$0x1f]
    %v52 = vld [vmem:[%s0 + $0x1] sm:$0xff]
    %v53 = vld [vmem:[%s0 + $0x9] sm:$0xff]
    %v54 = vld [vmem:[%s0 + $0x11] sm:$0xff]
    %v55 = vld [vmem:[%s0 + $0x19] sm:$0xff]
    %v56 = vld [vmem:[%s0 + $0x21] sm:$0xff]
    %v57 = vld [vmem:[%s0 + $0x29] sm:$0xff]
    %v58 = vld [vmem:[%s0 + $0x31] sm:$0xff]
    %v59 = vld [vmem:[%s0 + $0x39] sm:$0xff]
    %v60 = vld [vmem:[%s0 + $0x41] sm:$0xff]
    %v61 = vld [vmem:[%s0 + $0x49] sm:$0xff]
    %s62 = scalar_lea.vmem %s1, 24
    %v63 = vld [vmem:[%s62] sm:$0xff]
    %v64 = vld [vmem:[%s62 + $0x8] sm:$0xff]
    %v65 = vld [vmem:[%s62 + $0x10] sm:$0x1f]
    %vm66 = vcmask 171008
    %v68 = vsel %vm66, %v52, 0
    %v71 = vsel %vm66, %v53, 0
    %v74 = vsel %vm66, %v54, 0
    %v77 = vsel %vm66, %v55, 0
    %v80 = vsel %vm66, %v56, 0
    %v83 = vsel %vm66, %v57, 0
    %v86 = vsel %vm66, %v58, 0
    %v89 = vsel %vm66, %v59, 0
    %v92 = vsel %vm66, %v60, 0
    %v95 = vsel %vm66, %v61, 0
    %vm97 = vcmask 1044480
    %v99 = vsel %vm97, %v65, 0
    %101 = vmatpush.msra.mxu0 0.0
    %102 = vmatpush.msra.mxu0 0.0
    %103 = vmatpush.msra.mxu0 0.0
    %104 = vmatpush.msra.mxu0 0.0
    %105 = vmatpush.msra.mxu0 0.0
    %106 = vmatpush.msra.mxu0 0.0
    %107 = vmatpush.msra.mxu0 0.0
    %108 = vmatpush.msra.mxu0 0.0
    %109 = vmatpush.msra.mxu0 0.0
    %110 = vmatpush.msra.mxu0 0.0
    %111 = vmatpush.msra.mxu0 0.0
    %112 = vmatpush.msra.mxu0 0.0
    %113 = vmatpush.msra.mxu0 0.0
    %114 = vmatpush.msra.mxu0 %v99
    %115 = vmatpush.msra.mxu0 %v64
    %116 = vmatpush.msra.mxu0 %v63
    %117 = vmatmul.f32.gmra.mxu0 %v68
    %v118 = vpop.f32.mrf.mxu0
    %v119 = vadd.f32 0.0, %v118
    %120 = vmatmul.f32.gmra.mxu0 %v71
    %v121 = vpop.f32.mrf.mxu0
    %v122 = vadd.f32 0.0, %v121
    %123 = vmatmul.f32.gmra.mxu0 %v74
    %v124 = vpop.f32.mrf.mxu0
    %v125 = vadd.f32 0.0, %v124
    %126 = vmatmul.f32.gmra.mxu0 %v77
    %v127 = vpop.f32.mrf.mxu0
    %v128 = vadd.f32 0.0, %v127
    %129 = vmatmul.f32.gmra.mxu0 %v80
    %v130 = vpop.f32.mrf.mxu0
    %131 = vmatmul.f32.gmra.mxu0 %v83
    %v132 = vpop.f32.mrf.mxu0
    %v133 = vadd.f32 0.0, %v132
    %134 = vmatmul.f32.gmra.mxu0 %v86
    %v135 = vpop.f32.mrf.mxu0
    %v136 = vadd.f32 0.0, %v135
    %137 = vmatmul.f32.gmra.mxu0 %v89
    %v138 = vpop.f32.mrf.mxu0
    %v139 = vadd.f32 0.0, %v138
    %140 = vmatmul.f32.gmra.mxu0 %v92
    %v141 = vpop.f32.mrf.mxu0
    %v142 = vadd.f32 0.0, %v141
    %143 = vmatmul.f32.gmra.mxu0 %v95
    %v144 = vpop.f32.mrf.mxu0
    %145 = vdwg.mxu0
    %v147 = vsel %vm66, %v39, 0
    %v150 = vsel %vm66, %v40, 0
    %v153 = vsel %vm66, %v41, 0
    %v156 = vsel %vm66, %v42, 0
    %v159 = vsel %vm66, %v43, 0
    %v162 = vsel %vm66, %v44, 0
    %v165 = vsel %vm66, %v45, 0
    %v168 = vsel %vm66, %v46, 0
    %v171 = vsel %vm66, %v47, 0
    %v174 = vsel %vm66, %v48, 0
    %v177 = vsel %vm97, %v51, 0
    %179 = vmatpush.msra.mxu0 0.0
    %180 = vmatpush.msra.mxu0 0.0
    %181 = vmatpush.msra.mxu0 0.0
    %182 = vmatpush.msra.mxu0 0.0
    %183 = vmatpush.msra.mxu0 0.0
    %184 = vmatpush.msra.mxu0 0.0
    %185 = vmatpush.msra.mxu0 0.0
    %186 = vmatpush.msra.mxu0 0.0
    %187 = vmatpush.msra.mxu0 0.0
    %188 = vmatpush.msra.mxu0 0.0
    %189 = vmatpush.msra.mxu0 0.0
    %190 = vmatpush.msra.mxu0 0.0
    %191 = vmatpush.msra.mxu0 0.0
    %192 = vmatpush.msra.mxu0 %v177
    %193 = vmatpush.msra.mxu0 %v50
    %194 = vmatpush.msra.mxu0 %v49
    %195 = vmatmul.f32.gmra.mxu0 %v147
    %v196 = vpop.f32.mrf.mxu0
    %v197 = vadd.f32 %v119, %v196
    %198 = vmatmul.f32.gmra.mxu0 %v150
    %v199 = vpop.f32.mrf.mxu0
    %v200 = vadd.f32 %v122, %v199
    %201 = vmatmul.f32.gmra.mxu0 %v153
    %v202 = vpop.f32.mrf.mxu0
    %v203 = vadd.f32 %v125, %v202
    %204 = vmatmul.f32.gmra.mxu0 %v156
    %v205 = vpop.f32.mrf.mxu0
    %v206 = vadd.f32 %v128, %v205
    %207 = vmatmul.f32.gmra.mxu0 %v159
    %v208 = vpop.f32.mrf.mxu0
    %209 = vmatmul.f32.gmra.mxu0 %v162
    %v210 = vpop.f32.mrf.mxu0
    %v211 = vadd.f32 %v133, %v210
    %212 = vmatmul.f32.gmra.mxu0 %v165
    %v213 = vpop.f32.mrf.mxu0
    %v214 = vadd.f32 %v136, %v213
    %215 = vmatmul.f32.gmra.mxu0 %v168
    %v216 = vpop.f32.mrf.mxu0
    %v217 = vadd.f32 %v139, %v216
    %218 = vmatmul.f32.gmra.mxu0 %v171
    %v219 = vpop.f32.mrf.mxu0
    %v220 = vadd.f32 %v142, %v219
    %221 = vmatmul.f32.gmra.mxu0 %v174
    %v222 = vpop.f32.mrf.mxu0
    %223 = vdwg.mxu0
    %v224 = vld [vmem:[%s0 + $0x2] sm:$0xff]
    %v225 = vld [vmem:[%s0 + $0xa] sm:$0xff]
    %v226 = vld [vmem:[%s0 + $0x12] sm:$0xff]
    %v227 = vld [vmem:[%s0 + $0x1a] sm:$0xff]
    %v228 = vld [vmem:[%s0 + $0x22] sm:$0xff]
    %v229 = vld [vmem:[%s0 + $0x2a] sm:$0xff]
    %v230 = vld [vmem:[%s0 + $0x32] sm:$0xff]
    %v231 = vld [vmem:[%s0 + $0x3a] sm:$0xff]
    %v232 = vld [vmem:[%s0 + $0x42] sm:$0xff]
    %v233 = vld [vmem:[%s0 + $0x4a] sm:$0xff]
    %s234 = scalar_lea.vmem %s1, 48
    %v235 = vld [vmem:[%s234] sm:$0xff]
    %v236 = vld [vmem:[%s234 + $0x8] sm:$0xff]
    %v237 = vld [vmem:[%s234 + $0x10] sm:$0x1f]
    %v239 = vsel %vm66, %v224, 0
    %v242 = vsel %vm66, %v225, 0
    %v245 = vsel %vm66, %v226, 0
    %v248 = vsel %vm66, %v227, 0
    %v251 = vsel %vm66, %v228, 0
    %v254 = vsel %vm66, %v229, 0
    %v257 = vsel %vm66, %v230, 0
    %v260 = vsel %vm66, %v231, 0
    %v263 = vsel %vm66, %v232, 0
    %v266 = vsel %vm66, %v233, 0
    %v269 = vsel %vm97, %v237, 0
    %271 = vmatpush.msra.mxu0 0.0
    %272 = vmatpush.msra.mxu0 0.0
    %273 = vmatpush.msra.mxu0 0.0
    %274 = vmatpush.msra.mxu0 0.0
    %275 = vmatpush.msra.mxu0 0.0
    %276 = vmatpush.msra.mxu0 0.0
    %277 = vmatpush.msra.mxu0 0.0
    %278 = vmatpush.msra.mxu0 0.0
    %279 = vmatpush.msra.mxu0 0.0
    %280 = vmatpush.msra.mxu0 0.0
    %281 = vmatpush.msra.mxu0 0.0
    %282 = vmatpush.msra.mxu0 0.0
    %283 = vmatpush.msra.mxu0 0.0
    %284 = vmatpush.msra.mxu0 %v269
    %285 = vmatpush.msra.mxu0 %v236
    %286 = vmatpush.msra.mxu0 %v235
    %287 = vmatmul.f32.gmra.mxu0 %v239
    %v288 = vpop.f32.mrf.mxu0
    %v289 = vadd.f32 0.0, %v288
    %290 = vmatmul.f32.gmra.mxu0 %v242
    %v291 = vpop.f32.mrf.mxu0
    %v292 = vadd.f32 0.0, %v291
    %293 = vmatmul.f32.gmra.mxu0 %v245
    %v294 = vpop.f32.mrf.mxu0
    %v295 = vadd.f32 0.0, %v294
    %296 = vmatmul.f32.gmra.mxu0 %v248
    %v297 = vpop.f32.mrf.mxu0
    %v298 = vadd.f32 0.0, %v297
    %299 = vmatmul.f32.gmra.mxu0 %v251
    %v300 = vpop.f32.mrf.mxu0
    %301 = vmatmul.f32.gmra.mxu0 %v254
    %v302 = vpop.f32.mrf.mxu0
    %v303 = vadd.f32 0.0, %v302
    %304 = vmatmul.f32.gmra.mxu0 %v257
    %v305 = vpop.f32.mrf.mxu0
    %v306 = vadd.f32 0.0, %v305
    %307 = vmatmul.f32.gmra.mxu0 %v260
    %v308 = vpop.f32.mrf.mxu0
    %v309 = vadd.f32 0.0, %v308
    %310 = vmatmul.f32.gmra.mxu0 %v263
    %v311 = vpop.f32.mrf.mxu0
    %v312 = vadd.f32 0.0, %v311
    %313 = vmatmul.f32.gmra.mxu0 %v266
    %v314 = vpop.f32.mrf.mxu0
    %315 = vdwg.mxu0
    %v316 = vadd.f32 %v197, %v289
    %v317 = vadd.f32 %v200, %v292
    %v318 = vadd.f32 %v203, %v295
    %v319 = vadd.f32 %v206, %v298
    %v320 = vadd.f32 %v211, %v303
    %v321 = vadd.f32 %v214, %v306
    %v322 = vadd.f32 %v217, %v309
    %v323 = vadd.f32 %v220, %v312
    %v324 = vld [vmem:[%s0 + $0x3] sm:$0xff]
    %v325 = vld [vmem:[%s0 + $0xb] sm:$0xff]
    %v326 = vld [vmem:[%s0 + $0x13] sm:$0xff]
    %v327 = vld [vmem:[%s0 + $0x1b] sm:$0xff]
    %v328 = vld [vmem:[%s0 + $0x23] sm:$0xff]
    %v329 = vld [vmem:[%s0 + $0x2b] sm:$0xff]
    %v330 = vld [vmem:[%s0 + $0x33] sm:$0xff]
    %v331 = vld [vmem:[%s0 + $0x3b] sm:$0xff]
    %v332 = vld [vmem:[%s0 + $0x43] sm:$0xff]
    %v333 = vld [vmem:[%s0 + $0x4b] sm:$0xff]
    %s334 = scalar_lea.vmem %s1, 72
    %v335 = vld [vmem:[%s334] sm:$0xff]
    %v336 = vld [vmem:[%s334 + $0x8] sm:$0xff]
    %v337 = vld [vmem:[%s334 + $0x10] sm:$0x1f]
    %v339 = vsel %vm66, %v324, 0
    %v342 = vsel %vm66, %v325, 0
    %v345 = vsel %vm66, %v326, 0
    %v348 = vsel %vm66, %v327, 0
    %v351 = vsel %vm66, %v328, 0
    %v354 = vsel %vm66, %v329, 0
    %v357 = vsel %vm66, %v330, 0
    %v360 = vsel %vm66, %v331, 0
    %v363 = vsel %vm66, %v332, 0
    %v366 = vsel %vm66, %v333, 0
    %v369 = vsel %vm97, %v337, 0
    %371 = vmatpush.msra.mxu0 0.0
    %372 = vmatpush.msra.mxu0 0.0
    %373 = vmatpush.msra.mxu0 0.0
    %374 = vmatpush.msra.mxu0 0.0
    %375 = vmatpush.msra.mxu0 0.0
    %376 = vmatpush.msra.mxu0 0.0
    %377 = vmatpush.msra.mxu0 0.0
    %378 = vmatpush.msra.mxu0 0.0
    %379 = vmatpush.msra.mxu0 0.0
    %380 = vmatpush.msra.mxu0 0.0
    %381 = vmatpush.msra.mxu0 0.0
    %382 = vmatpush.msra.mxu0 0.0
    %383 = vmatpush.msra.mxu0 0.0
    %384 = vmatpush.msra.mxu0 %v369
    %385 = vmatpush.msra.mxu0 %v336
    %386 = vmatpush.msra.mxu0 %v335
    %387 = vmatmul.f32.gmra.mxu0 %v339
    %v388 = vpop.f32.mrf.mxu0
    %v389 = vadd.f32 0.0, %v388
    %390 = vmatmul.f32.gmra.mxu0 %v342
    %v391 = vpop.f32.mrf.mxu0
    %v392 = vadd.f32 0.0, %v391
    %393 = vmatmul.f32.gmra.mxu0 %v345
    %v394 = vpop.f32.mrf.mxu0
    %v395 = vadd.f32 0.0, %v394
    %396 = vmatmul.f32.gmra.mxu0 %v348
    %v397 = vpop.f32.mrf.mxu0
    %v398 = vadd.f32 0.0, %v397
    %399 = vmatmul.f32.gmra.mxu0 %v351
    %v400 = vpop.f32.mrf.mxu0
    %401 = vmatmul.f32.gmra.mxu0 %v354
    %v402 = vpop.f32.mrf.mxu0
    %v403 = vadd.f32 0.0, %v402
    %404 = vmatmul.f32.gmra.mxu0 %v357
    %v405 = vpop.f32.mrf.mxu0
    %v406 = vadd.f32 0.0, %v405
    %407 = vmatmul.f32.gmra.mxu0 %v360
    %v408 = vpop.f32.mrf.mxu0
    %v409 = vadd.f32 0.0, %v408
    %410 = vmatmul.f32.gmra.mxu0 %v363
    %v411 = vpop.f32.mrf.mxu0
    %v412 = vadd.f32 0.0, %v411
    %413 = vmatmul.f32.gmra.mxu0 %v366
    %v414 = vpop.f32.mrf.mxu0
    %415 = vdwg.mxu0
    %v416 = vadd.f32 %v316, %v389
    %v417 = vadd.f32 %v317, %v392
    %v418 = vadd.f32 %v318, %v395
    %v419 = vadd.f32 %v319, %v398
    %v420 = vadd.f32 %v320, %v403
    %v421 = vadd.f32 %v321, %v406
    %v422 = vadd.f32 %v322, %v409
    %v423 = vadd.f32 %v323, %v412
    %v424 = vld [vmem:[%s0 + $0x4] sm:$0xff]
    %v425 = vld [vmem:[%s0 + $0xc] sm:$0xff]
    %v426 = vld [vmem:[%s0 + $0x14] sm:$0xff]
    %v427 = vld [vmem:[%s0 + $0x1c] sm:$0xff]
    %v428 = vld [vmem:[%s0 + $0x24] sm:$0xff]
    %v429 = vld [vmem:[%s0 + $0x2c] sm:$0xff]
    %v430 = vld [vmem:[%s0 + $0x34] sm:$0xff]
    %v431 = vld [vmem:[%s0 + $0x3c] sm:$0xff]
    %v432 = vld [vmem:[%s0 + $0x44] sm:$0xff]
    %v433 = vld [vmem:[%s0 + $0x4c] sm:$0xff]
    %s434 = scalar_lea.vmem %s1, 96
    %v435 = vld [vmem:[%s434] sm:$0xff]
    %v436 = vld [vmem:[%s434 + $0x8] sm:$0xff]
    %v437 = vld [vmem:[%s434 + $0x10] sm:$0x1f]
    %v439 = vsel %vm66, %v424, 0
    %v442 = vsel %vm66, %v425, 0
    %v445 = vsel %vm66, %v426, 0
    %v448 = vsel %vm66, %v427, 0
    %v451 = vsel %vm66, %v428, 0
    %v454 = vsel %vm66, %v429, 0
    %v457 = vsel %vm66, %v430, 0
    %v460 = vsel %vm66, %v431, 0
    %v463 = vsel %vm66, %v432, 0
    %v466 = vsel %vm66, %v433, 0
    %v469 = vsel %vm97, %v437, 0
    %471 = vmatpush.msra.mxu0 0.0
    %472 = vmatpush.msra.mxu0 0.0
    %473 = vmatpush.msra.mxu0 0.0
    %474 = vmatpush.msra.mxu0 0.0
    %475 = vmatpush.msra.mxu0 0.0
    %476 = vmatpush.msra.mxu0 0.0
    %477 = vmatpush.msra.mxu0 0.0
    %478 = vmatpush.msra.mxu0 0.0
    %479 = vmatpush.msra.mxu0 0.0
    %480 = vmatpush.msra.mxu0 0.0
    %481 = vmatpush.msra.mxu0 0.0
    %482 = vmatpush.msra.mxu0 0.0
    %483 = vmatpush.msra.mxu0 0.0
    %484 = vmatpush.msra.mxu0 %v469
    %485 = vmatpush.msra.mxu0 %v436
    %486 = vmatpush.msra.mxu0 %v435
    %487 = vmatmul.f32.gmra.mxu0 %v439
    %v488 = vpop.f32.mrf.mxu0
    %v489 = vadd.f32 0.0, %v488
    %490 = vmatmul.f32.gmra.mxu0 %v442
    %v491 = vpop.f32.mrf.mxu0
    %v492 = vadd.f32 0.0, %v491
    %493 = vmatmul.f32.gmra.mxu0 %v445
    %v494 = vpop.f32.mrf.mxu0
    %v495 = vadd.f32 0.0, %v494
    %496 = vmatmul.f32.gmra.mxu0 %v448
    %v497 = vpop.f32.mrf.mxu0
    %v498 = vadd.f32 0.0, %v497
    %499 = vmatmul.f32.gmra.mxu0 %v451
    %v500 = vpop.f32.mrf.mxu0
    %501 = vmatmul.f32.gmra.mxu0 %v454
    %v502 = vpop.f32.mrf.mxu0
    %v503 = vadd.f32 0.0, %v502
    %504 = vmatmul.f32.gmra.mxu0 %v457
    %v505 = vpop.f32.mrf.mxu0
    %v506 = vadd.f32 0.0, %v505
    %507 = vmatmul.f32.gmra.mxu0 %v460
    %v508 = vpop.f32.mrf.mxu0
    %v509 = vadd.f32 0.0, %v508
    %510 = vmatmul.f32.gmra.mxu0 %v463
    %v511 = vpop.f32.mrf.mxu0
    %v512 = vadd.f32 0.0, %v511
    %513 = vmatmul.f32.gmra.mxu0 %v466
    %v514 = vpop.f32.mrf.mxu0
    %515 = vdwg.mxu0
    %v516 = vadd.f32 %v416, %v489
    %v517 = vadd.f32 %v417, %v492
    %v518 = vadd.f32 %v418, %v495
    %v519 = vadd.f32 %v419, %v498
    %v520 = vadd.f32 %v420, %v503
    %v521 = vadd.f32 %v421, %v506
    %v522 = vadd.f32 %v422, %v509
    %v523 = vadd.f32 %v423, %v512
    %v524 = vld [vmem:[%s0 + $0x5] sm:$0xff]
    %v525 = vld [vmem:[%s0 + $0xd] sm:$0xff]
    %v526 = vld [vmem:[%s0 + $0x15] sm:$0xff]
    %v527 = vld [vmem:[%s0 + $0x1d] sm:$0xff]
    %v528 = vld [vmem:[%s0 + $0x25] sm:$0xff]
    %v529 = vld [vmem:[%s0 + $0x2d] sm:$0xff]
    %v530 = vld [vmem:[%s0 + $0x35] sm:$0xff]
    %v531 = vld [vmem:[%s0 + $0x3d] sm:$0xff]
    %v532 = vld [vmem:[%s0 + $0x45] sm:$0xff]
    %v533 = vld [vmem:[%s0 + $0x4d] sm:$0xff]
    %s534 = scalar_lea.vmem %s1, 120
    %v535 = vld [vmem:[%s534] sm:$0xff]
    %v536 = vld [vmem:[%s534 + $0x8] sm:$0xff]
    %v537 = vld [vmem:[%s534 + $0x10] sm:$0x1f]
    %v539 = vsel %vm66, %v524, 0
    %v542 = vsel %vm66, %v525, 0
    %v545 = vsel %vm66, %v526, 0
    %v548 = vsel %vm66, %v527, 0
    %v551 = vsel %vm66, %v528, 0
    %v554 = vsel %vm66, %v529, 0
    %v557 = vsel %vm66, %v530, 0
    %v560 = vsel %vm66, %v531, 0
    %v563 = vsel %vm66, %v532, 0
    %v566 = vsel %vm66, %v533, 0
    %v569 = vsel %vm97, %v537, 0
    %571 = vmatpush.msra.mxu0 0.0
    %572 = vmatpush.msra.mxu0 0.0
    %573 = vmatpush.msra.mxu0 0.0
    %574 = vmatpush.msra.mxu0 0.0
    %575 = vmatpush.msra.mxu0 0.0
    %576 = vmatpush.msra.mxu0 0.0
    %577 = vmatpush.msra.mxu0 0.0
    %578 = vmatpush.msra.mxu0 0.0
    %579 = vmatpush.msra.mxu0 0.0
    %580 = vmatpush.msra.mxu0 0.0
    %581 = vmatpush.msra.mxu0 0.0
    %582 = vmatpush.msra.mxu0 0.0
    %583 = vmatpush.msra.mxu0 0.0
    %584 = vmatpush.msra.mxu0 %v569
    %585 = vmatpush.msra.mxu0 %v536
    %586 = vmatpush.msra.mxu0 %v535
    %587 = vmatmul.f32.gmra.mxu0 %v539
    %v588 = vpop.f32.mrf.mxu0
    %v589 = vadd.f32 0.0, %v588
    %590 = vmatmul.f32.gmra.mxu0 %v542
    %v591 = vpop.f32.mrf.mxu0
    %v592 = vadd.f32 0.0, %v591
    %593 = vmatmul.f32.gmra.mxu0 %v545
    %v594 = vpop.f32.mrf.mxu0
    %v595 = vadd.f32 0.0, %v594
    %596 = vmatmul.f32.gmra.mxu0 %v548
    %v597 = vpop.f32.mrf.mxu0
    %v598 = vadd.f32 0.0, %v597
    %599 = vmatmul.f32.gmra.mxu0 %v551
    %v600 = vpop.f32.mrf.mxu0
    %601 = vmatmul.f32.gmra.mxu0 %v554
    %v602 = vpop.f32.mrf.mxu0
    %v603 = vadd.f32 0.0, %v602
    %604 = vmatmul.f32.gmra.mxu0 %v557
    %v605 = vpop.f32.mrf.mxu0
    %v606 = vadd.f32 0.0, %v605
    %607 = vmatmul.f32.gmra.mxu0 %v560
    %v608 = vpop.f32.mrf.mxu0
    %v609 = vadd.f32 0.0, %v608
    %610 = vmatmul.f32.gmra.mxu0 %v563
    %v611 = vpop.f32.mrf.mxu0
    %v612 = vadd.f32 0.0, %v611
    %613 = vmatmul.f32.gmra.mxu0 %v566
    %v614 = vpop.f32.mrf.mxu0
    %615 = vdwg.mxu0
    %v616 = vadd.f32 %v516, %v589
    %v617 = vadd.f32 %v517, %v592
    %v618 = vadd.f32 %v518, %v595
    %v619 = vadd.f32 %v519, %v598
    %v620 = vadd.f32 %v520, %v603
    %v621 = vadd.f32 %v521, %v606
    %v622 = vadd.f32 %v522, %v609
    %v623 = vadd.f32 %v523, %v612
    %v624 = vld [vmem:[%s0 + $0x6] sm:$0xff]
    %v625 = vld [vmem:[%s0 + $0xe] sm:$0xff]
    %v626 = vld [vmem:[%s0 + $0x16] sm:$0xff]
    %v627 = vld [vmem:[%s0 + $0x1e] sm:$0xff]
    %v628 = vld [vmem:[%s0 + $0x26] sm:$0xff]
    %v629 = vld [vmem:[%s0 + $0x2e] sm:$0xff]
    %v630 = vld [vmem:[%s0 + $0x36] sm:$0xff]
    %v631 = vld [vmem:[%s0 + $0x3e] sm:$0xff]
    %v632 = vld [vmem:[%s0 + $0x46] sm:$0xff]
    %v633 = vld [vmem:[%s0 + $0x4e] sm:$0xff]
    %s634 = scalar_lea.vmem %s1, 144
    %v635 = vld [vmem:[%s634] sm:$0xff]
    %v636 = vld [vmem:[%s634 + $0x8] sm:$0xff]
    %v637 = vld [vmem:[%s634 + $0x10] sm:$0x1f]
    %v639 = vsel %vm66, %v624, 0
    %v642 = vsel %vm66, %v625, 0
    %v645 = vsel %vm66, %v626, 0
    %v648 = vsel %vm66, %v627, 0
    %v651 = vsel %vm66, %v628, 0
    %v654 = vsel %vm66, %v629, 0
    %v657 = vsel %vm66, %v630, 0
    %v660 = vsel %vm66, %v631, 0
    %v663 = vsel %vm66, %v632, 0
    %v666 = vsel %vm66, %v633, 0
    %v669 = vsel %vm97, %v637, 0
    %671 = vmatpush.msra.mxu0 0.0
    %672 = vmatpush.msra.mxu0 0.0
    %673 = vmatpush.msra.mxu0 0.0
    %674 = vmatpush.msra.mxu0 0.0
    %675 = vmatpush.msra.mxu0 0.0
    %676 = vmatpush.msra.mxu0 0.0
    %677 = vmatpush.msra.mxu0 0.0
    %678 = vmatpush.msra.mxu0 0.0
    %679 = vmatpush.msra.mxu0 0.0
    %680 = vmatpush.msra.mxu0 0.0
    %681 = vmatpush.msra.mxu0 0.0
    %682 = vmatpush.msra.mxu0 0.0
    %683 = vmatpush.msra.mxu0 0.0
    %684 = vmatpush.msra.mxu0 %v669
    %685 = vmatpush.msra.mxu0 %v636
    %686 = vmatpush.msra.mxu0 %v635
    %687 = vmatmul.f32.gmra.mxu0 %v639
    %v688 = vpop.f32.mrf.mxu0
    %v689 = vadd.f32 0.0, %v688
    %690 = vmatmul.f32.gmra.mxu0 %v642
    %v691 = vpop.f32.mrf.mxu0
    %v692 = vadd.f32 0.0, %v691
    %693 = vmatmul.f32.gmra.mxu0 %v645
    %v694 = vpop.f32.mrf.mxu0
    %v695 = vadd.f32 0.0, %v694
    %696 = vmatmul.f32.gmra.mxu0 %v648
    %v697 = vpop.f32.mrf.mxu0
    %v698 = vadd.f32 0.0, %v697
    %699 = vmatmul.f32.gmra.mxu0 %v651
    %v700 = vpop.f32.mrf.mxu0
    %701 = vmatmul.f32.gmra.mxu0 %v654
    %v702 = vpop.f32.mrf.mxu0
    %v703 = vadd.f32 0.0, %v702
    %704 = vmatmul.f32.gmra.mxu0 %v657
    %v705 = vpop.f32.mrf.mxu0
    %v706 = vadd.f32 0.0, %v705
    %707 = vmatmul.f32.gmra.mxu0 %v660
    %v708 = vpop.f32.mrf.mxu0
    %v709 = vadd.f32 0.0, %v708
    %710 = vmatmul.f32.gmra.mxu0 %v663
    %v711 = vpop.f32.mrf.mxu0
    %v712 = vadd.f32 0.0, %v711
    %713 = vmatmul.f32.gmra.mxu0 %v666
    %v714 = vpop.f32.mrf.mxu0
    %715 = vdwg.mxu0
    %v716 = vadd.f32 %v616, %v689
    %v717 = vadd.f32 %v617, %v692
    %v718 = vadd.f32 %v618, %v695
    %v719 = vadd.f32 %v619, %v698
    %v720 = vadd.f32 %v620, %v703
    %v721 = vadd.f32 %v621, %v706
    %v722 = vadd.f32 %v622, %v709
    %v723 = vadd.f32 %v623, %v712
    %v724 = vld [vmem:[%s0 + $0x7] sm:$0xff]
    %v725 = vld [vmem:[%s0 + $0xf] sm:$0xff]
    %v726 = vld [vmem:[%s0 + $0x17] sm:$0xff]
    %v727 = vld [vmem:[%s0 + $0x1f] sm:$0xff]
    %v728 = vld [vmem:[%s0 + $0x27] sm:$0xff]
    %v729 = vld [vmem:[%s0 + $0x2f] sm:$0xff]
    %v730 = vld [vmem:[%s0 + $0x37] sm:$0xff]
    %v731 = vld [vmem:[%s0 + $0x3f] sm:$0xff]
    %v732 = vld [vmem:[%s0 + $0x47] sm:$0xff]
    %v733 = vld [vmem:[%s0 + $0x4f] sm:$0xff]
    %s734 = scalar_lea.vmem %s1, 168
    %v735 = vld [vmem:[%s734] sm:$0xff]
    %v736 = vld [vmem:[%s734 + $0x8] sm:$0xff]
    %v737 = vld [vmem:[%s734 + $0x10] sm:$0x1f]
    %v739 = vsel %vm66, %v724, 0
    %v742 = vsel %vm66, %v725, 0
    %v745 = vsel %vm66, %v726, 0
    %v748 = vsel %vm66, %v727, 0
    %v751 = vsel %vm66, %v728, 0
    %v754 = vsel %vm66, %v729, 0
    %v757 = vsel %vm66, %v730, 0
    %v760 = vsel %vm66, %v731, 0
    %v763 = vsel %vm66, %v732, 0
    %v766 = vsel %vm66, %v733, 0
    %v769 = vsel %vm97, %v737, 0
    %771 = vmatpush.msra.mxu0 0.0
    %772 = vmatpush.msra.mxu0 0.0
    %773 = vmatpush.msra.mxu0 0.0
    %774 = vmatpush.msra.mxu0 0.0
    %775 = vmatpush.msra.mxu0 0.0
    %776 = vmatpush.msra.mxu0 0.0
    %777 = vmatpush.msra.mxu0 0.0
    %778 = vmatpush.msra.mxu0 0.0
    %779 = vmatpush.msra.mxu0 0.0
    %780 = vmatpush.msra.mxu0 0.0
    %781 = vmatpush.msra.mxu0 0.0
    %782 = vmatpush.msra.mxu0 0.0
    %783 = vmatpush.msra.mxu0 0.0
    %784 = vmatpush.msra.mxu0 %v769
    %785 = vmatpush.msra.mxu0 %v736
    %786 = vmatpush.msra.mxu0 %v735
    %787 = vmatmul.f32.gmra.mxu0 %v739
    %v788 = vpop.f32.mrf.mxu0
    %v789 = vadd.f32 0.0, %v788
    %790 = vmatmul.f32.gmra.mxu0 %v742
    %v791 = vpop.f32.mrf.mxu0
    %v792 = vadd.f32 0.0, %v791
    %793 = vmatmul.f32.gmra.mxu0 %v745
    %v794 = vpop.f32.mrf.mxu0
    %v795 = vadd.f32 0.0, %v794
    %796 = vmatmul.f32.gmra.mxu0 %v748
    %v797 = vpop.f32.mrf.mxu0
    %v798 = vadd.f32 0.0, %v797
    %799 = vmatmul.f32.gmra.mxu0 %v751
    %v800 = vpop.f32.mrf.mxu0
    %801 = vmatmul.f32.gmra.mxu0 %v754
    %v802 = vpop.f32.mrf.mxu0
    %v803 = vadd.f32 0.0, %v802
    %804 = vmatmul.f32.gmra.mxu0 %v757
    %v805 = vpop.f32.mrf.mxu0
    %v806 = vadd.f32 0.0, %v805
    %807 = vmatmul.f32.gmra.mxu0 %v760
    %v808 = vpop.f32.mrf.mxu0
    %v809 = vadd.f32 0.0, %v808
    %810 = vmatmul.f32.gmra.mxu0 %v763
    %v811 = vpop.f32.mrf.mxu0
    %v812 = vadd.f32 0.0, %v811
    %813 = vmatmul.f32.gmra.mxu0 %v766
    %v814 = vpop.f32.mrf.mxu0
    %815 = vdwg.mxu0
    %v816 = vadd.f32 %v716, %v789
    %v817 = vadd.f32 %v717, %v792
    %v818 = vadd.f32 %v718, %v795
    %v819 = vadd.f32 %v719, %v798
    %v820 = vadd.f32 %v720, %v803
    %v821 = vadd.f32 %v721, %v806
    %v822 = vadd.f32 %v722, %v809
    %v823 = vadd.f32 %v723, %v812
    %vm824 = vcmask 130048
    %v825 = vsel %vm824, %v816, -inf
    %v826 = vsel %vm824, %v817, -inf
    %v827 = vsel %vm824, %v818, -inf
    %vm828 = vcmask 124928
    %v829 = vsel %vm828, %v819, -inf
    %v830 = vmax.f32 %v825, %v826
    %v831 = vmax.f32 %v827, %v829
    %v832 = vmax.f32 %v830, %v831
    %v833 = vrot.slane %v832, 4
    %v834 = vmax.f32 %v832, %v833
    %v835 = vrot.slane %v834, 2
    %v836 = vmax.f32 %v834, %v835
    %v837 = vrot.slane %v836, 1
    %v838 = vmax.f32 %v836, %v837
    %v839 = vsel %vm824, %v820, -inf
    %v840 = vsel %vm824, %v821, -inf
    %v841 = vsel %vm824, %v822, -inf
    %v842 = vsel %vm828, %v823, -inf
    %v843 = vmax.f32 %v839, %v840
    %v844 = vmax.f32 %v841, %v842
    %v845 = vmax.f32 %v843, %v844
    %v846 = vrot.slane %v845, 4
    %v847 = vmax.f32 %v845, %v846
    %v848 = vrot.slane %v847, 2
    %v849 = vmax.f32 %v847, %v848
    %v850 = vrot.slane %v849, 1
    %v851 = vmax.f32 %v849, %v850
    %vm852 = vcmask 1040384
    %v853 = vsel %vm852, %v838, %v851
    %v854 = vld [vmem:[%s2] sm:$0x1]
    %v856 = vperm.slane %v854, 0
    %v858 = vadd.f32 %v853, %v856
    %v859 = vld [vmem:[%s3] sm:$0xff]
    %v860 = vld [vmem:[%s3 + $0x8] sm:$0xff]
    %v861 = vld [vmem:[%s3 + $0x10] sm:$0x1f]
    %s862 = scalar_lea.vmem %s3, 24
    %v863 = vld [vmem:[%s862] sm:$0xff]
    %v864 = vld [vmem:[%s862 + $0x8] sm:$0xff]
    %v865 = vld [vmem:[%s862 + $0x10] sm:$0x1f]
    %v867 = vsel %vm97, %v865, 0
    %869 = vmatpush.msra.mxu0 0.0
    %870 = vmatpush.msra.mxu0 0.0
    %871 = vmatpush.msra.mxu0 0.0
    %872 = vmatpush.msra.mxu0 0.0
    %873 = vmatpush.msra.mxu0 0.0
    %874 = vmatpush.msra.mxu0 0.0
    %875 = vmatpush.msra.mxu0 0.0
    %876 = vmatpush.msra.mxu0 0.0
    %877 = vmatpush.msra.mxu0 0.0
    %878 = vmatpush.msra.mxu0 0.0
    %879 = vmatpush.msra.mxu0 0.0
    %880 = vmatpush.msra.mxu0 0.0
    %881 = vmatpush.msra.mxu0 0.0
    %882 = vmatpush.msra.mxu0 %v867
    %883 = vmatpush.msra.mxu0 %v864
    %884 = vmatpush.msra.mxu0 %v863
    %885 = vmatmul.f32.gmra.mxu0 %v68
    %v886 = vpop.f32.mrf.mxu0
    %v887 = vadd.f32 0.0, %v886
    %888 = vmatmul.f32.gmra.mxu0 %v71
    %v889 = vpop.f32.mrf.mxu0
    %v890 = vadd.f32 0.0, %v889
    %891 = vmatmul.f32.gmra.mxu0 %v74
    %v892 = vpop.f32.mrf.mxu0
    %v893 = vadd.f32 0.0, %v892
    %894 = vmatmul.f32.gmra.mxu0 %v77
    %v895 = vpop.f32.mrf.mxu0
    %896 = vmatmul.f32.gmra.mxu0 %v80
    %v897 = vpop.f32.mrf.mxu0
    %898 = vmatmul.f32.gmra.mxu0 %v83
    %v899 = vpop.f32.mrf.mxu0
    %v900 = vadd.f32 0.0, %v899
    %901 = vmatmul.f32.gmra.mxu0 %v86
    %v902 = vpop.f32.mrf.mxu0
    %v903 = vadd.f32 0.0, %v902
    %904 = vmatmul.f32.gmra.mxu0 %v89
    %v905 = vpop.f32.mrf.mxu0
    %v906 = vadd.f32 0.0, %v905
    %907 = vmatmul.f32.gmra.mxu0 %v92
    %v908 = vpop.f32.mrf.mxu0
    %909 = vmatmul.f32.gmra.mxu0 %v95
    %v910 = vpop.f32.mrf.mxu0
    %911 = vdwg.mxu0
    %v913 = vsel %vm97, %v861, 0
    %915 = vmatpush.msra.mxu0 0.0
    %916 = vmatpush.msra.mxu0 0.0
    %917 = vmatpush.msra.mxu0 0.0
    %918 = vmatpush.msra.mxu0 0.0
    %919 = vmatpush.msra.mxu0 0.0
    %920 = vmatpush.msra.mxu0 0.0
    %921 = vmatpush.msra.mxu0 0.0
    %922 = vmatpush.msra.mxu0 0.0
    %923 = vmatpush.msra.mxu0 0.0
    %924 = vmatpush.msra.mxu0 0.0
    %925 = vmatpush.msra.mxu0 0.0
    %926 = vmatpush.msra.mxu0 0.0
    %927 = vmatpush.msra.mxu0 0.0
    %928 = vmatpush.msra.mxu0 %v913
    %929 = vmatpush.msra.mxu0 %v860
    %930 = vmatpush.msra.mxu0 %v859
    %931 = vmatmul.f32.gmra.mxu0 %v147
    %v932 = vpop.f32.mrf.mxu0
    %v933 = vadd.f32 %v887, %v932
    %934 = vmatmul.f32.gmra.mxu0 %v150
    %v935 = vpop.f32.mrf.mxu0
    %v936 = vadd.f32 %v890, %v935
    %937 = vmatmul.f32.gmra.mxu0 %v153
    %v938 = vpop.f32.mrf.mxu0
    %v939 = vadd.f32 %v893, %v938
    %940 = vmatmul.f32.gmra.mxu0 %v156
    %v941 = vpop.f32.mrf.mxu0
    %942 = vmatmul.f32.gmra.mxu0 %v159
    %v943 = vpop.f32.mrf.mxu0
    %944 = vmatmul.f32.gmra.mxu0 %v162
    %v945 = vpop.f32.mrf.mxu0
    %v946 = vadd.f32 %v900, %v945
    %947 = vmatmul.f32.gmra.mxu0 %v165
    %v948 = vpop.f32.mrf.mxu0
    %v949 = vadd.f32 %v903, %v948
    %950 = vmatmul.f32.gmra.mxu0 %v168
    %v951 = vpop.f32.mrf.mxu0
    %v952 = vadd.f32 %v906, %v951
    %953 = vmatmul.f32.gmra.mxu0 %v171
    %v954 = vpop.f32.mrf.mxu0
    %955 = vmatmul.f32.gmra.mxu0 %v174
    %v956 = vpop.f32.mrf.mxu0
    %957 = vdwg.mxu0
    %s958 = scalar_lea.vmem %s3, 48
    %v959 = vld [vmem:[%s958] sm:$0xff]
    %v960 = vld [vmem:[%s958 + $0x8] sm:$0xff]
    %v961 = vld [vmem:[%s958 + $0x10] sm:$0x1f]
    %v963 = vsel %vm97, %v961, 0
    %965 = vmatpush.msra.mxu0 0.0
    %966 = vmatpush.msra.mxu0 0.0
    %967 = vmatpush.msra.mxu0 0.0
    %968 = vmatpush.msra.mxu0 0.0
    %969 = vmatpush.msra.mxu0 0.0
    %970 = vmatpush.msra.mxu0 0.0
    %971 = vmatpush.msra.mxu0 0.0
    %972 = vmatpush.msra.mxu0 0.0
    %973 = vmatpush.msra.mxu0 0.0
    %974 = vmatpush.msra.mxu0 0.0
    %975 = vmatpush.msra.mxu0 0.0
    %976 = vmatpush.msra.mxu0 0.0
    %977 = vmatpush.msra.mxu0 0.0
    %978 = vmatpush.msra.mxu0 %v963
    %979 = vmatpush.msra.mxu0 %v960
    %980 = vmatpush.msra.mxu0 %v959
    %981 = vmatmul.f32.gmra.mxu0 %v239
    %v982 = vpop.f32.mrf.mxu0
    %v983 = vadd.f32 0.0, %v982
    %984 = vmatmul.f32.gmra.mxu0 %v242
    %v985 = vpop.f32.mrf.mxu0
    %v986 = vadd.f32 0.0, %v985
    %987 = vmatmul.f32.gmra.mxu0 %v245
    %v988 = vpop.f32.mrf.mxu0
    %v989 = vadd.f32 0.0, %v988
    %990 = vmatmul.f32.gmra.mxu0 %v248
    %v991 = vpop.f32.mrf.mxu0
    %992 = vmatmul.f32.gmra.mxu0 %v251
    %v993 = vpop.f32.mrf.mxu0
    %994 = vmatmul.f32.gmra.mxu0 %v254
    %v995 = vpop.f32.mrf.mxu0
    %v996 = vadd.f32 0.0, %v995
    %997 = vmatmul.f32.gmra.mxu0 %v257
    %v998 = vpop.f32.mrf.mxu0
    %v999 = vadd.f32 0.0, %v998
    %1000 = vmatmul.f32.gmra.mxu0 %v260
    %v1001 = vpop.f32.mrf.mxu0
    %v1002 = vadd.f32 0.0, %v1001
    %1003 = vmatmul.f32.gmra.mxu0 %v263
    %v1004 = vpop.f32.mrf.mxu0
    %1005 = vmatmul.f32.gmra.mxu0 %v266
    %v1006 = vpop.f32.mrf.mxu0
    %1007 = vdwg.mxu0
    %v1008 = vadd.f32 %v933, %v983
    %v1009 = vadd.f32 %v936, %v986
    %v1010 = vadd.f32 %v939, %v989
    %v1011 = vadd.f32 %v946, %v996
    %v1012 = vadd.f32 %v949, %v999
    %v1013 = vadd.f32 %v952, %v1002
    %s1014 = scalar_lea.vmem %s3, 72
    %v1015 = vld [vmem:[%s1014] sm:$0xff]
    %v1016 = vld [vmem:[%s1014 + $0x8] sm:$0xff]
    %v1017 = vld [vmem:[%s1014 + $0x10] sm:$0x1f]
    %v1019 = vsel %vm97, %v1017, 0
    %1021 = vmatpush.msra.mxu0 0.0
    %1022 = vmatpush.msra.mxu0 0.0
    %1023 = vmatpush.msra.mxu0 0.0
    %1024 = vmatpush.msra.mxu0 0.0
    %1025 = vmatpush.msra.mxu0 0.0
    %1026 = vmatpush.msra.mxu0 0.0
    %1027 = vmatpush.msra.mxu0 0.0
    %1028 = vmatpush.msra.mxu0 0.0
    %1029 = vmatpush.msra.mxu0 0.0
    %1030 = vmatpush.msra.mxu0 0.0
    %1031 = vmatpush.msra.mxu0 0.0
    %1032 = vmatpush.msra.mxu0 0.0
    %1033 = vmatpush.msra.mxu0 0.0
    %1034 = vmatpush.msra.mxu0 %v1019
    %1035 = vmatpush.msra.mxu0 %v1016
    %1036 = vmatpush.msra.mxu0 %v1015
    %1037 = vmatmul.f32.gmra.mxu0 %v339
    %v1038 = vpop.f32.mrf.mxu0
    %v1039 = vadd.f32 0.0, %v1038
    %1040 = vmatmul.f32.gmra.mxu0 %v342
    %v1041 = vpop.f32.mrf.mxu0
    %v1042 = vadd.f32 0.0, %v1041
    %1043 = vmatmul.f32.gmra.mxu0 %v345
    %v1044 = vpop.f32.mrf.mxu0
    %v1045 = vadd.f32 0.0, %v1044
    %1046 = vmatmul.f32.gmra.mxu0 %v348
    %v1047 = vpop.f32.mrf.mxu0
    %1048 = vmatmul.f32.gmra.mxu0 %v351
    %v1049 = vpop.f32.mrf.mxu0
    %1050 = vmatmul.f32.gmra.mxu0 %v354
    %v1051 = vpop.f32.mrf.mxu0
    %v1052 = vadd.f32 0.0, %v1051
    %1053 = vmatmul.f32.gmra.mxu0 %v357
    %v1054 = vpop.f32.mrf.mxu0
    %v1055 = vadd.f32 0.0, %v1054
    %1056 = vmatmul.f32.gmra.mxu0 %v360
    %v1057 = vpop.f32.mrf.mxu0
    %v1058 = vadd.f32 0.0, %v1057
    %1059 = vmatmul.f32.gmra.mxu0 %v363
    %v1060 = vpop.f32.mrf.mxu0
    %1061 = vmatmul.f32.gmra.mxu0 %v366
    %v1062 = vpop.f32.mrf.mxu0
    %1063 = vdwg.mxu0
    %v1064 = vadd.f32 %v1008, %v1039
    %v1065 = vadd.f32 %v1009, %v1042
    %v1066 = vadd.f32 %v1010, %v1045
    %v1067 = vadd.f32 %v1011, %v1052
    %v1068 = vadd.f32 %v1012, %v1055
    %v1069 = vadd.f32 %v1013, %v1058
    %s1070 = scalar_lea.vmem %s3, 96
    %v1071 = vld [vmem:[%s1070] sm:$0xff]
    %v1072 = vld [vmem:[%s1070 + $0x8] sm:$0xff]
    %v1073 = vld [vmem:[%s1070 + $0x10] sm:$0x1f]
    %v1075 = vsel %vm97, %v1073, 0
    %1077 = vmatpush.msra.mxu0 0.0
    %1078 = vmatpush.msra.mxu0 0.0
    %1079 = vmatpush.msra.mxu0 0.0
    %1080 = vmatpush.msra.mxu0 0.0
    %1081 = vmatpush.msra.mxu0 0.0
    %1082 = vmatpush.msra.mxu0 0.0
    %1083 = vmatpush.msra.mxu0 0.0
    %1084 = vmatpush.msra.mxu0 0.0
    %1085 = vmatpush.msra.mxu0 0.0
    %1086 = vmatpush.msra.mxu0 0.0
    %1087 = vmatpush.msra.mxu0 0.0
    %1088 = vmatpush.msra.mxu0 0.0
    %1089 = vmatpush.msra.mxu0 0.0
    %1090 = vmatpush.msra.mxu0 %v1075
    %1091 = vmatpush.msra.mxu0 %v1072
    %1092 = vmatpush.msra.mxu0 %v1071
    %1093 = vmatmul.f32.gmra.mxu0 %v439
    %v1094 = vpop.f32.mrf.mxu0
    %v1095 = vadd.f32 0.0, %v1094
    %1096 = vmatmul.f32.gmra.mxu0 %v442
    %v1097 = vpop.f32.mrf.mxu0
    %v1098 = vadd.f32 0.0, %v1097
    %1099 = vmatmul.f32.gmra.mxu0 %v445
    %v1100 = vpop.f32.mrf.mxu0
    %v1101 = vadd.f32 0.0, %v1100
    %1102 = vmatmul.f32.gmra.mxu0 %v448
    %v1103 = vpop.f32.mrf.mxu0
    %1104 = vmatmul.f32.gmra.mxu0 %v451
    %v1105 = vpop.f32.mrf.mxu0
    %1106 = vmatmul.f32.gmra.mxu0 %v454
    %v1107 = vpop.f32.mrf.mxu0
    %v1108 = vadd.f32 0.0, %v1107
    %1109 = vmatmul.f32.gmra.mxu0 %v457
    %v1110 = vpop.f32.mrf.mxu0
    %v1111 = vadd.f32 0.0, %v1110
    %1112 = vmatmul.f32.gmra.mxu0 %v460
    %v1113 = vpop.f32.mrf.mxu0
    %v1114 = vadd.f32 0.0, %v1113
    %1115 = vmatmul.f32.gmra.mxu0 %v463
    %v1116 = vpop.f32.mrf.mxu0
    %1117 = vmatmul.f32.gmra.mxu0 %v466
    %v1118 = vpop.f32.mrf.mxu0
    %1119 = vdwg.mxu0
    %v1120 = vadd.f32 %v1064, %v1095
    %v1121 = vadd.f32 %v1065, %v1098
    %v1122 = vadd.f32 %v1066, %v1101
    %v1123 = vadd.f32 %v1067, %v1108
    %v1124 = vadd.f32 %v1068, %v1111
    %v1125 = vadd.f32 %v1069, %v1114
    %s1126 = scalar_lea.vmem %s3, 120
    %v1127 = vld [vmem:[%s1126] sm:$0xff]
    %v1128 = vld [vmem:[%s1126 + $0x8] sm:$0xff]
    %v1129 = vld [vmem:[%s1126 + $0x10] sm:$0x1f]
    %v1131 = vsel %vm97, %v1129, 0
    %1133 = vmatpush.msra.mxu0 0.0
    %1134 = vmatpush.msra.mxu0 0.0
    %1135 = vmatpush.msra.mxu0 0.0
    %1136 = vmatpush.msra.mxu0 0.0
    %1137 = vmatpush.msra.mxu0 0.0
    %1138 = vmatpush.msra.mxu0 0.0
    %1139 = vmatpush.msra.mxu0 0.0
    %1140 = vmatpush.msra.mxu0 0.0
    %1141 = vmatpush.msra.mxu0 0.0
    %1142 = vmatpush.msra.mxu0 0.0
    %1143 = vmatpush.msra.mxu0 0.0
    %1144 = vmatpush.msra.mxu0 0.0
    %1145 = vmatpush.msra.mxu0 0.0
    %1146 = vmatpush.msra.mxu0 %v1131
    %1147 = vmatpush.msra.mxu0 %v1128
    %1148 = vmatpush.msra.mxu0 %v1127
    %1149 = vmatmul.f32.gmra.mxu0 %v539
    %v1150 = vpop.f32.mrf.mxu0
    %v1151 = vadd.f32 0.0, %v1150
    %1152 = vmatmul.f32.gmra.mxu0 %v542
    %v1153 = vpop.f32.mrf.mxu0
    %v1154 = vadd.f32 0.0, %v1153
    %1155 = vmatmul.f32.gmra.mxu0 %v545
    %v1156 = vpop.f32.mrf.mxu0
    %v1157 = vadd.f32 0.0, %v1156
    %1158 = vmatmul.f32.gmra.mxu0 %v548
    %v1159 = vpop.f32.mrf.mxu0
    %1160 = vmatmul.f32.gmra.mxu0 %v551
    %v1161 = vpop.f32.mrf.mxu0
    %1162 = vmatmul.f32.gmra.mxu0 %v554
    %v1163 = vpop.f32.mrf.mxu0
    %v1164 = vadd.f32 0.0, %v1163
    %1165 = vmatmul.f32.gmra.mxu0 %v557
    %v1166 = vpop.f32.mrf.mxu0
    %v1167 = vadd.f32 0.0, %v1166
    %1168 = vmatmul.f32.gmra.mxu0 %v560
    %v1169 = vpop.f32.mrf.mxu0
    %v1170 = vadd.f32 0.0, %v1169
    %1171 = vmatmul.f32.gmra.mxu0 %v563
    %v1172 = vpop.f32.mrf.mxu0
    %1173 = vmatmul.f32.gmra.mxu0 %v566
    %v1174 = vpop.f32.mrf.mxu0
    %1175 = vdwg.mxu0
    %v1176 = vadd.f32 %v1120, %v1151
    %v1177 = vadd.f32 %v1121, %v1154
    %v1178 = vadd.f32 %v1122, %v1157
    %v1179 = vadd.f32 %v1123, %v1164
    %v1180 = vadd.f32 %v1124, %v1167
    %v1181 = vadd.f32 %v1125, %v1170
    %s1182 = scalar_lea.vmem %s3, 144
    %v1183 = vld [vmem:[%s1182] sm:$0xff]
    %v1184 = vld [vmem:[%s1182 + $0x8] sm:$0xff]
    %v1185 = vld [vmem:[%s1182 + $0x10] sm:$0x1f]
    %v1187 = vsel %vm97, %v1185, 0
    %1189 = vmatpush.msra.mxu0 0.0
    %1190 = vmatpush.msra.mxu0 0.0
    %1191 = vmatpush.msra.mxu0 0.0
    %1192 = vmatpush.msra.mxu0 0.0
    %1193 = vmatpush.msra.mxu0 0.0
    %1194 = vmatpush.msra.mxu0 0.0
    %1195 = vmatpush.msra.mxu0 0.0
    %1196 = vmatpush.msra.mxu0 0.0
    %1197 = vmatpush.msra.mxu0 0.0
    %1198 = vmatpush.msra.mxu0 0.0
    %1199 = vmatpush.msra.mxu0 0.0
    %1200 = vmatpush.msra.mxu0 0.0
    %1201 = vmatpush.msra.mxu0 0.0
    %1202 = vmatpush.msra.mxu0 %v1187
    %1203 = vmatpush.msra.mxu0 %v1184
    %1204 = vmatpush.msra.mxu0 %v1183
    %1205 = vmatmul.f32.gmra.mxu0 %v639
    %v1206 = vpop.f32.mrf.mxu0
    %v1207 = vadd.f32 0.0, %v1206
    %1208 = vmatmul.f32.gmra.mxu0 %v642
    %v1209 = vpop.f32.mrf.mxu0
    %v1210 = vadd.f32 0.0, %v1209
    %1211 = vmatmul.f32.gmra.mxu0 %v645
    %v1212 = vpop.f32.mrf.mxu0
    %v1213 = vadd.f32 0.0, %v1212
    %1214 = vmatmul.f32.gmra.mxu0 %v648
    %v1215 = vpop.f32.mrf.mxu0
    %1216 = vmatmul.f32.gmra.mxu0 %v651
    %v1217 = vpop.f32.mrf.mxu0
    %1218 = vmatmul.f32.gmra.mxu0 %v654
    %v1219 = vpop.f32.mrf.mxu0
    %v1220 = vadd.f32 0.0, %v1219
    %1221 = vmatmul.f32.gmra.mxu0 %v657
    %v1222 = vpop.f32.mrf.mxu0
    %v1223 = vadd.f32 0.0, %v1222
    %1224 = vmatmul.f32.gmra.mxu0 %v660
    %v1225 = vpop.f32.mrf.mxu0
    %v1226 = vadd.f32 0.0, %v1225
    %1227 = vmatmul.f32.gmra.mxu0 %v663
    %v1228 = vpop.f32.mrf.mxu0
    %1229 = vmatmul.f32.gmra.mxu0 %v666
    %v1230 = vpop.f32.mrf.mxu0
    %1231 = vdwg.mxu0
    %v1232 = vadd.f32 %v1176, %v1207
    %v1233 = vadd.f32 %v1177, %v1210
    %v1234 = vadd.f32 %v1178, %v1213
    %v1235 = vadd.f32 %v1179, %v1220
    %v1236 = vadd.f32 %v1180, %v1223
    %v1237 = vadd.f32 %v1181, %v1226
    %s1238 = scalar_lea.vmem %s3, 168
    %v1239 = vld [vmem:[%s1238] sm:$0xff]
    %v1240 = vld [vmem:[%s1238 + $0x8] sm:$0xff]
    %v1241 = vld [vmem:[%s1238 + $0x10] sm:$0x1f]
    %v1243 = vsel %vm97, %v1241, 0
    %1245 = vmatpush.msra.mxu0 0.0
    %1246 = vmatpush.msra.mxu0 0.0
    %1247 = vmatpush.msra.mxu0 0.0
    %1248 = vmatpush.msra.mxu0 0.0
    %1249 = vmatpush.msra.mxu0 0.0
    %1250 = vmatpush.msra.mxu0 0.0
    %1251 = vmatpush.msra.mxu0 0.0
    %1252 = vmatpush.msra.mxu0 0.0
    %1253 = vmatpush.msra.mxu0 0.0
    %1254 = vmatpush.msra.mxu0 0.0
    %1255 = vmatpush.msra.mxu0 0.0
    %1256 = vmatpush.msra.mxu0 0.0
    %1257 = vmatpush.msra.mxu0 0.0
    %1258 = vmatpush.msra.mxu0 %v1243
    %1259 = vmatpush.msra.mxu0 %v1240
    %1260 = vmatpush.msra.mxu0 %v1239
    %1261 = vmatmul.f32.gmra.mxu0 %v739
    %v1262 = vpop.f32.mrf.mxu0
    %v1263 = vadd.f32 0.0, %v1262
    %1264 = vmatmul.f32.gmra.mxu0 %v742
    %v1265 = vpop.f32.mrf.mxu0
    %v1266 = vadd.f32 0.0, %v1265
    %1267 = vmatmul.f32.gmra.mxu0 %v745
    %v1268 = vpop.f32.mrf.mxu0
    %v1269 = vadd.f32 0.0, %v1268
    %1270 = vmatmul.f32.gmra.mxu0 %v748
    %v1271 = vpop.f32.mrf.mxu0
    %1272 = vmatmul.f32.gmra.mxu0 %v751
    %v1273 = vpop.f32.mrf.mxu0
    %1274 = vmatmul.f32.gmra.mxu0 %v754
    %v1275 = vpop.f32.mrf.mxu0
    %v1276 = vadd.f32 0.0, %v1275
    %1277 = vmatmul.f32.gmra.mxu0 %v757
    %v1278 = vpop.f32.mrf.mxu0
    %v1279 = vadd.f32 0.0, %v1278
    %1280 = vmatmul.f32.gmra.mxu0 %v760
    %v1281 = vpop.f32.mrf.mxu0
    %v1282 = vadd.f32 0.0, %v1281
    %1283 = vmatmul.f32.gmra.mxu0 %v763
    %v1284 = vpop.f32.mrf.mxu0
    %1285 = vmatmul.f32.gmra.mxu0 %v766
    %v1286 = vpop.f32.mrf.mxu0
    %1287 = vdwg.mxu0
    %v1288 = vadd.f32 %v1232, %v1263
    %v1289 = vadd.f32 %v1233, %v1266
    %v1290 = vadd.f32 %v1234, %v1269
    %v1291 = vadd.f32 %v1235, %v1276
    %v1292 = vadd.f32 %v1236, %v1279
    %v1293 = vadd.f32 %v1237, %v1282
    %v1294 = vld [vmem:[%s0 + $0x8] sm:$0xff]
    %v1295 = vld [vmem:[%s0 + $0x10] sm:$0xff]
    %v1296 = vld [vmem:[%s0 + $0x18] sm:$0xff]
    %v1297 = vld [vmem:[%s0 + $0x20] sm:$0xff]
    %v1298 = vld [vmem:[%s0 + $0x28] sm:$0xff]
    %v1299 = vld [vmem:[%s0 + $0x30] sm:$0xff]
    %v1300 = vld [vmem:[%s0 + $0x38] sm:$0xff]
    %v1301 = vld [vmem:[%s0 + $0x40] sm:$0xff]
    %v1302 = vld [vmem:[%s0 + $0x48] sm:$0xff]
    %v1303 = vld [vmem:[%s0 + $0x50] sm:$0xff]
    %s1304 = scalar_lea.vmem %s3, 192
    %v1305 = vld [vmem:[%s1304] sm:$0xff]
    %v1306 = vld [vmem:[%s1304 + $0x8] sm:$0xff]
    %v1307 = vld [vmem:[%s1304 + $0x10] sm:$0x1f]
    %v1309 = vsel %vm66, %v1294, 0
    %v1312 = vsel %vm66, %v1295, 0
    %v1315 = vsel %vm66, %v1296, 0
    %v1318 = vsel %vm66, %v1297, 0
    %v1321 = vsel %vm66, %v1298, 0
    %v1324 = vsel %vm66, %v1299, 0
    %v1327 = vsel %vm66, %v1300, 0
    %v1330 = vsel %vm66, %v1301, 0
    %v1333 = vsel %vm66, %v1302, 0
    %v1336 = vsel %vm66, %v1303, 0
    %v1339 = vsel %vm97, %v1307, 0
    %1341 = vmatpush.msra.mxu0 0.0
    %1342 = vmatpush.msra.mxu0 0.0
    %1343 = vmatpush.msra.mxu0 0.0
    %1344 = vmatpush.msra.mxu0 0.0
    %1345 = vmatpush.msra.mxu0 0.0
    %1346 = vmatpush.msra.mxu0 0.0
    %1347 = vmatpush.msra.mxu0 0.0
    %1348 = vmatpush.msra.mxu0 0.0
    %1349 = vmatpush.msra.mxu0 0.0
    %1350 = vmatpush.msra.mxu0 0.0
    %1351 = vmatpush.msra.mxu0 0.0
    %1352 = vmatpush.msra.mxu0 0.0
    %1353 = vmatpush.msra.mxu0 0.0
    %1354 = vmatpush.msra.mxu0 %v1339
    %1355 = vmatpush.msra.mxu0 %v1306
    %1356 = vmatpush.msra.mxu0 %v1305
    %1357 = vmatmul.f32.gmra.mxu0 %v1309
    %v1358 = vpop.f32.mrf.mxu0
    %v1359 = vadd.f32 0.0, %v1358
    %1360 = vmatmul.f32.gmra.mxu0 %v1312
    %v1361 = vpop.f32.mrf.mxu0
    %v1362 = vadd.f32 0.0, %v1361
    %1363 = vmatmul.f32.gmra.mxu0 %v1315
    %v1364 = vpop.f32.mrf.mxu0
    %v1365 = vadd.f32 0.0, %v1364
    %1366 = vmatmul.f32.gmra.mxu0 %v1318
    %v1367 = vpop.f32.mrf.mxu0
    %1368 = vmatmul.f32.gmra.mxu0 %v1321
    %v1369 = vpop.f32.mrf.mxu0
    %1370 = vmatmul.f32.gmra.mxu0 %v1324
    %v1371 = vpop.f32.mrf.mxu0
    %v1372 = vadd.f32 0.0, %v1371
    %1373 = vmatmul.f32.gmra.mxu0 %v1327
    %v1374 = vpop.f32.mrf.mxu0
    %v1375 = vadd.f32 0.0, %v1374
    %1376 = vmatmul.f32.gmra.mxu0 %v1330
    %v1377 = vpop.f32.mrf.mxu0
    %v1378 = vadd.f32 0.0, %v1377
    %1379 = vmatmul.f32.gmra.mxu0 %v1333
    %v1380 = vpop.f32.mrf.mxu0
    %1381 = vmatmul.f32.gmra.mxu0 %v1336
    %v1382 = vpop.f32.mrf.mxu0
    %1383 = vdwg.mxu0
    %v1384 = vadd.f32 %v1288, %v1359
    %v1385 = vadd.f32 %v1289, %v1362
    %v1386 = vadd.f32 %v1290, %v1365
    %v1387 = vadd.f32 %v1291, %v1372
    %v1388 = vadd.f32 %v1292, %v1375
    %v1389 = vadd.f32 %v1293, %v1378
    %v1390 = vld [vmem:[%s0 + $0x9] sm:$0xff]
    %v1391 = vld [vmem:[%s0 + $0x11] sm:$0xff]
    %v1392 = vld [vmem:[%s0 + $0x19] sm:$0xff]
    %v1393 = vld [vmem:[%s0 + $0x21] sm:$0xff]
    %v1394 = vld [vmem:[%s0 + $0x29] sm:$0xff]
    %v1395 = vld [vmem:[%s0 + $0x31] sm:$0xff]
    %v1396 = vld [vmem:[%s0 + $0x39] sm:$0xff]
    %v1397 = vld [vmem:[%s0 + $0x41] sm:$0xff]
    %v1398 = vld [vmem:[%s0 + $0x49] sm:$0xff]
    %v1399 = vld [vmem:[%s0 + $0x51] sm:$0xff]
    %s1400 = scalar_lea.vmem %s3, 216
    %v1401 = vld [vmem:[%s1400] sm:$0xff]
    %v1402 = vld [vmem:[%s1400 + $0x8] sm:$0xff]
    %v1403 = vld [vmem:[%s1400 + $0x10] sm:$0x1f]
    %v1405 = vsel %vm66, %v1390, 0
    %v1408 = vsel %vm66, %v1391, 0
    %v1411 = vsel %vm66, %v1392, 0
    %v1414 = vsel %vm66, %v1393, 0
    %v1417 = vsel %vm66, %v1394, 0
    %v1420 = vsel %vm66, %v1395, 0
    %v1423 = vsel %vm66, %v1396, 0
    %v1426 = vsel %vm66, %v1397, 0
    %v1429 = vsel %vm66, %v1398, 0
    %v1432 = vsel %vm66, %v1399, 0
    %v1435 = vsel %vm97, %v1403, 0
    %1437 = vmatpush.msra.mxu0 0.0
    %1438 = vmatpush.msra.mxu0 0.0
    %1439 = vmatpush.msra.mxu0 0.0
    %1440 = vmatpush.msra.mxu0 0.0
    %1441 = vmatpush.msra.mxu0 0.0
    %1442 = vmatpush.msra.mxu0 0.0
    %1443 = vmatpush.msra.mxu0 0.0
    %1444 = vmatpush.msra.mxu0 0.0
    %1445 = vmatpush.msra.mxu0 0.0
    %1446 = vmatpush.msra.mxu0 0.0
    %1447 = vmatpush.msra.mxu0 0.0
    %1448 = vmatpush.msra.mxu0 0.0
    %1449 = vmatpush.msra.mxu0 0.0
    %1450 = vmatpush.msra.mxu0 %v1435
    %1451 = vmatpush.msra.mxu0 %v1402
    %1452 = vmatpush.msra.mxu0 %v1401
    %1453 = vmatmul.f32.gmra.mxu0 %v1405
    %v1454 = vpop.f32.mrf.mxu0
    %v1455 = vadd.f32 0.0, %v1454
    %1456 = vmatmul.f32.gmra.mxu0 %v1408
    %v1457 = vpop.f32.mrf.mxu0
    %v1458 = vadd.f32 0.0, %v1457
    %1459 = vmatmul.f32.gmra.mxu0 %v1411
    %v1460 = vpop.f32.mrf.mxu0
    %v1461 = vadd.f32 0.0, %v1460
    %1462 = vmatmul.f32.gmra.mxu0 %v1414
    %v1463 = vpop.f32.mrf.mxu0
    %1464 = vmatmul.f32.gmra.mxu0 %v1417
    %v1465 = vpop.f32.mrf.mxu0
    %1466 = vmatmul.f32.gmra.mxu0 %v1420
    %v1467 = vpop.f32.mrf.mxu0
    %v1468 = vadd.f32 0.0, %v1467
    %1469 = vmatmul.f32.gmra.mxu0 %v1423
    %v1470 = vpop.f32.mrf.mxu0
    %v1471 = vadd.f32 0.0, %v1470
    %1472 = vmatmul.f32.gmra.mxu0 %v1426
    %v1473 = vpop.f32.mrf.mxu0
    %v1474 = vadd.f32 0.0, %v1473
    %1475 = vmatmul.f32.gmra.mxu0 %v1429
    %v1476 = vpop.f32.mrf.mxu0
    %1477 = vmatmul.f32.gmra.mxu0 %v1432
    %v1478 = vpop.f32.mrf.mxu0
    %1479 = vdwg.mxu0
    %v1480 = vadd.f32 %v1384, %v1455
    %v1481 = vadd.f32 %v1385, %v1458
    %v1482 = vadd.f32 %v1386, %v1461
    %v1483 = vadd.f32 %v1387, %v1468
    %v1484 = vadd.f32 %v1388, %v1471
    %v1485 = vadd.f32 %v1389, %v1474
    %v1486 = vld [vmem:[%s0 + $0xa] sm:$0xff]
    %v1487 = vld [vmem:[%s0 + $0x12] sm:$0xff]
    %v1488 = vld [vmem:[%s0 + $0x1a] sm:$0xff]
    %v1489 = vld [vmem:[%s0 + $0x22] sm:$0xff]
    %v1490 = vld [vmem:[%s0 + $0x2a] sm:$0xff]
    %v1491 = vld [vmem:[%s0 + $0x32] sm:$0xff]
    %v1492 = vld [vmem:[%s0 + $0x3a] sm:$0xff]
    %v1493 = vld [vmem:[%s0 + $0x42] sm:$0xff]
    %v1494 = vld [vmem:[%s0 + $0x4a] sm:$0xff]
    %v1495 = vld [vmem:[%s0 + $0x52] sm:$0xff]
    %s1496 = scalar_lea.vmem %s3, 240
    %v1497 = vld [vmem:[%s1496] sm:$0xff]
    %v1498 = vld [vmem:[%s1496 + $0x8] sm:$0xff]
    %v1499 = vld [vmem:[%s1496 + $0x10] sm:$0x1f]
    %v1501 = vsel %vm66, %v1486, 0
    %v1504 = vsel %vm66, %v1487, 0
    %v1507 = vsel %vm66, %v1488, 0
    %v1510 = vsel %vm66, %v1489, 0
    %v1513 = vsel %vm66, %v1490, 0
    %v1516 = vsel %vm66, %v1491, 0
    %v1519 = vsel %vm66, %v1492, 0
    %v1522 = vsel %vm66, %v1493, 0
    %v1525 = vsel %vm66, %v1494, 0
    %v1528 = vsel %vm66, %v1495, 0
    %v1531 = vsel %vm97, %v1499, 0
    %1533 = vmatpush.msra.mxu0 0.0
    %1534 = vmatpush.msra.mxu0 0.0
    %1535 = vmatpush.msra.mxu0 0.0
    %1536 = vmatpush.msra.mxu0 0.0
    %1537 = vmatpush.msra.mxu0 0.0
    %1538 = vmatpush.msra.mxu0 0.0
    %1539 = vmatpush.msra.mxu0 0.0
    %1540 = vmatpush.msra.mxu0 0.0
    %1541 = vmatpush.msra.mxu0 0.0
    %1542 = vmatpush.msra.mxu0 0.0
    %1543 = vmatpush.msra.mxu0 0.0
    %1544 = vmatpush.msra.mxu0 0.0
    %1545 = vmatpush.msra.mxu0 0.0
    %1546 = vmatpush.msra.mxu0 %v1531
    %1547 = vmatpush.msra.mxu0 %v1498
    %1548 = vmatpush.msra.mxu0 %v1497
    %1549 = vmatmul.f32.gmra.mxu0 %v1501
    %v1550 = vpop.f32.mrf.mxu0
    %v1551 = vadd.f32 0.0, %v1550
    %1552 = vmatmul.f32.gmra.mxu0 %v1504
    %v1553 = vpop.f32.mrf.mxu0
    %v1554 = vadd.f32 0.0, %v1553
    %1555 = vmatmul.f32.gmra.mxu0 %v1507
    %v1556 = vpop.f32.mrf.mxu0
    %v1557 = vadd.f32 0.0, %v1556
    %1558 = vmatmul.f32.gmra.mxu0 %v1510
    %v1559 = vpop.f32.mrf.mxu0
    %1560 = vmatmul.f32.gmra.mxu0 %v1513
    %v1561 = vpop.f32.mrf.mxu0
    %1562 = vmatmul.f32.gmra.mxu0 %v1516
    %v1563 = vpop.f32.mrf.mxu0
    %v1564 = vadd.f32 0.0, %v1563
    %1565 = vmatmul.f32.gmra.mxu0 %v1519
    %v1566 = vpop.f32.mrf.mxu0
    %v1567 = vadd.f32 0.0, %v1566
    %1568 = vmatmul.f32.gmra.mxu0 %v1522
    %v1569 = vpop.f32.mrf.mxu0
    %v1570 = vadd.f32 0.0, %v1569
    %1571 = vmatmul.f32.gmra.mxu0 %v1525
    %v1572 = vpop.f32.mrf.mxu0
    %1573 = vmatmul.f32.gmra.mxu0 %v1528
    %v1574 = vpop.f32.mrf.mxu0
    %1575 = vdwg.mxu0
    %v1576 = vadd.f32 %v1480, %v1551
    %v1577 = vadd.f32 %v1481, %v1554
    %v1578 = vadd.f32 %v1482, %v1557
    %v1579 = vadd.f32 %v1483, %v1564
    %v1580 = vadd.f32 %v1484, %v1567
    %v1581 = vadd.f32 %v1485, %v1570
    %v1582 = vld [vmem:[%s0 + $0xb] sm:$0xff]
    %v1583 = vld [vmem:[%s0 + $0x13] sm:$0xff]
    %v1584 = vld [vmem:[%s0 + $0x1b] sm:$0xff]
    %v1585 = vld [vmem:[%s0 + $0x23] sm:$0xff]
    %v1586 = vld [vmem:[%s0 + $0x2b] sm:$0xff]
    %v1587 = vld [vmem:[%s0 + $0x33] sm:$0xff]
    %v1588 = vld [vmem:[%s0 + $0x3b] sm:$0xff]
    %v1589 = vld [vmem:[%s0 + $0x43] sm:$0xff]
    %v1590 = vld [vmem:[%s0 + $0x4b] sm:$0xff]
    %v1591 = vld [vmem:[%s0 + $0x53] sm:$0xff]
    %s1592 = scalar_lea.vmem %s3, 264
    %v1593 = vld [vmem:[%s1592] sm:$0xff]
    %v1594 = vld [vmem:[%s1592 + $0x8] sm:$0xff]
    %v1595 = vld [vmem:[%s1592 + $0x10] sm:$0x1f]
    %v1597 = vsel %vm66, %v1582, 0
    %v1600 = vsel %vm66, %v1583, 0
    %v1603 = vsel %vm66, %v1584, 0
    %v1606 = vsel %vm66, %v1585, 0
    %v1609 = vsel %vm66, %v1586, 0
    %v1612 = vsel %vm66, %v1587, 0
    %v1615 = vsel %vm66, %v1588, 0
    %v1618 = vsel %vm66, %v1589, 0
    %v1621 = vsel %vm66, %v1590, 0
    %v1624 = vsel %vm66, %v1591, 0
    %v1627 = vsel %vm97, %v1595, 0
    %1629 = vmatpush.msra.mxu0 0.0
    %1630 = vmatpush.msra.mxu0 0.0
    %1631 = vmatpush.msra.mxu0 0.0
    %1632 = vmatpush.msra.mxu0 0.0
    %1633 = vmatpush.msra.mxu0 0.0
    %1634 = vmatpush.msra.mxu0 0.0
    %1635 = vmatpush.msra.mxu0 0.0
    %1636 = vmatpush.msra.mxu0 0.0
    %1637 = vmatpush.msra.mxu0 0.0
    %1638 = vmatpush.msra.mxu0 0.0
    %1639 = vmatpush.msra.mxu0 0.0
    %1640 = vmatpush.msra.mxu0 0.0
    %1641 = vmatpush.msra.mxu0 0.0
    %1642 = vmatpush.msra.mxu0 %v1627
    %1643 = vmatpush.msra.mxu0 %v1594
    %1644 = vmatpush.msra.mxu0 %v1593
    %1645 = vmatmul.f32.gmra.mxu0 %v1597
    %v1646 = vpop.f32.mrf.mxu0
    %v1647 = vadd.f32 0.0, %v1646
    %1648 = vmatmul.f32.gmra.mxu0 %v1600
    %v1649 = vpop.f32.mrf.mxu0
    %v1650 = vadd.f32 0.0, %v1649
    %1651 = vmatmul.f32.gmra.mxu0 %v1603
    %v1652 = vpop.f32.mrf.mxu0
    %v1653 = vadd.f32 0.0, %v1652
    %1654 = vmatmul.f32.gmra.mxu0 %v1606
    %v1655 = vpop.f32.mrf.mxu0
    %1656 = vmatmul.f32.gmra.mxu0 %v1609
    %v1657 = vpop.f32.mrf.mxu0
    %1658 = vmatmul.f32.gmra.mxu0 %v1612
    %v1659 = vpop.f32.mrf.mxu0
    %v1660 = vadd.f32 0.0, %v1659
    %1661 = vmatmul.f32.gmra.mxu0 %v1615
    %v1662 = vpop.f32.mrf.mxu0
    %v1663 = vadd.f32 0.0, %v1662
    %1664 = vmatmul.f32.gmra.mxu0 %v1618
    %v1665 = vpop.f32.mrf.mxu0
    %v1666 = vadd.f32 0.0, %v1665
    %1667 = vmatmul.f32.gmra.mxu0 %v1621
    %v1668 = vpop.f32.mrf.mxu0
    %1669 = vmatmul.f32.gmra.mxu0 %v1624
    %v1670 = vpop.f32.mrf.mxu0
    %1671 = vdwg.mxu0
    %v1672 = vadd.f32 %v1576, %v1647
    %v1673 = vadd.f32 %v1577, %v1650
    %v1674 = vadd.f32 %v1578, %v1653
    %v1675 = vadd.f32 %v1579, %v1660
    %v1676 = vadd.f32 %v1580, %v1663
    %v1677 = vadd.f32 %v1581, %v1666
    %v1678 = vld [vmem:[%s0 + $0xc] sm:$0xff]
    %v1679 = vld [vmem:[%s0 + $0x14] sm:$0xff]
    %v1680 = vld [vmem:[%s0 + $0x1c] sm:$0xff]
    %v1681 = vld [vmem:[%s0 + $0x24] sm:$0xff]
    %v1682 = vld [vmem:[%s0 + $0x2c] sm:$0xff]
    %v1683 = vld [vmem:[%s0 + $0x34] sm:$0xff]
    %v1684 = vld [vmem:[%s0 + $0x3c] sm:$0xff]
    %v1685 = vld [vmem:[%s0 + $0x44] sm:$0xff]
    %v1686 = vld [vmem:[%s0 + $0x4c] sm:$0xff]
    %v1687 = vld [vmem:[%s0 + $0x54] sm:$0xff]
    %s1688 = scalar_lea.vmem %s3, 288
    %v1689 = vld [vmem:[%s1688] sm:$0xff]
    %v1690 = vld [vmem:[%s1688 + $0x8] sm:$0xff]
    %v1691 = vld [vmem:[%s1688 + $0x10] sm:$0x1f]
    %v1693 = vsel %vm66, %v1678, 0
    %v1696 = vsel %vm66, %v1679, 0
    %v1699 = vsel %vm66, %v1680, 0
    %v1702 = vsel %vm66, %v1681, 0
    %v1705 = vsel %vm66, %v1682, 0
    %v1708 = vsel %vm66, %v1683, 0
    %v1711 = vsel %vm66, %v1684, 0
    %v1714 = vsel %vm66, %v1685, 0
    %v1717 = vsel %vm66, %v1686, 0
    %v1720 = vsel %vm66, %v1687, 0
    %v1723 = vsel %vm97, %v1691, 0
    %1725 = vmatpush.msra.mxu0 0.0
    %1726 = vmatpush.msra.mxu0 0.0
    %1727 = vmatpush.msra.mxu0 0.0
    %1728 = vmatpush.msra.mxu0 0.0
    %1729 = vmatpush.msra.mxu0 0.0
    %1730 = vmatpush.msra.mxu0 0.0
    %1731 = vmatpush.msra.mxu0 0.0
    %1732 = vmatpush.msra.mxu0 0.0
    %1733 = vmatpush.msra.mxu0 0.0
    %1734 = vmatpush.msra.mxu0 0.0
    %1735 = vmatpush.msra.mxu0 0.0
    %1736 = vmatpush.msra.mxu0 0.0
    %1737 = vmatpush.msra.mxu0 0.0
    %1738 = vmatpush.msra.mxu0 %v1723
    %1739 = vmatpush.msra.mxu0 %v1690
    %1740 = vmatpush.msra.mxu0 %v1689
    %1741 = vmatmul.f32.gmra.mxu0 %v1693
    %v1742 = vpop.f32.mrf.mxu0
    %v1743 = vadd.f32 0.0, %v1742
    %1744 = vmatmul.f32.gmra.mxu0 %v1696
    %v1745 = vpop.f32.mrf.mxu0
    %v1746 = vadd.f32 0.0, %v1745
    %1747 = vmatmul.f32.gmra.mxu0 %v1699
    %v1748 = vpop.f32.mrf.mxu0
    %v1749 = vadd.f32 0.0, %v1748
    %1750 = vmatmul.f32.gmra.mxu0 %v1702
    %v1751 = vpop.f32.mrf.mxu0
    %1752 = vmatmul.f32.gmra.mxu0 %v1705
    %v1753 = vpop.f32.mrf.mxu0
    %1754 = vmatmul.f32.gmra.mxu0 %v1708
    %v1755 = vpop.f32.mrf.mxu0
    %v1756 = vadd.f32 0.0, %v1755
    %1757 = vmatmul.f32.gmra.mxu0 %v1711
    %v1758 = vpop.f32.mrf.mxu0
    %v1759 = vadd.f32 0.0, %v1758
    %1760 = vmatmul.f32.gmra.mxu0 %v1714
    %v1761 = vpop.f32.mrf.mxu0
    %v1762 = vadd.f32 0.0, %v1761
    %1763 = vmatmul.f32.gmra.mxu0 %v1717
    %v1764 = vpop.f32.mrf.mxu0
    %1765 = vmatmul.f32.gmra.mxu0 %v1720
    %v1766 = vpop.f32.mrf.mxu0
    %1767 = vdwg.mxu0
    %v1768 = vadd.f32 %v1672, %v1743
    %v1769 = vadd.f32 %v1673, %v1746
    %v1770 = vadd.f32 %v1674, %v1749
    %v1771 = vadd.f32 %v1675, %v1756
    %v1772 = vadd.f32 %v1676, %v1759
    %v1773 = vadd.f32 %v1677, %v1762
    %v1774 = vld [vmem:[%s0 + $0xd] sm:$0xff]
    %v1775 = vld [vmem:[%s0 + $0x15] sm:$0xff]
    %v1776 = vld [vmem:[%s0 + $0x1d] sm:$0xff]
    %v1777 = vld [vmem:[%s0 + $0x25] sm:$0xff]
    %v1778 = vld [vmem:[%s0 + $0x2d] sm:$0xff]
    %v1779 = vld [vmem:[%s0 + $0x35] sm:$0xff]
    %v1780 = vld [vmem:[%s0 + $0x3d] sm:$0xff]
    %v1781 = vld [vmem:[%s0 + $0x45] sm:$0xff]
    %v1782 = vld [vmem:[%s0 + $0x4d] sm:$0xff]
    %v1783 = vld [vmem:[%s0 + $0x55] sm:$0xff]
    %s1784 = scalar_lea.vmem %s3, 312
    %v1785 = vld [vmem:[%s1784] sm:$0xff]
    %v1786 = vld [vmem:[%s1784 + $0x8] sm:$0xff]
    %v1787 = vld [vmem:[%s1784 + $0x10] sm:$0x1f]
    %v1789 = vsel %vm66, %v1774, 0
    %v1792 = vsel %vm66, %v1775, 0
    %v1795 = vsel %vm66, %v1776, 0
    %v1798 = vsel %vm66, %v1777, 0
    %v1801 = vsel %vm66, %v1778, 0
    %v1804 = vsel %vm66, %v1779, 0
    %v1807 = vsel %vm66, %v1780, 0
    %v1810 = vsel %vm66, %v1781, 0
    %v1813 = vsel %vm66, %v1782, 0
    %v1816 = vsel %vm66, %v1783, 0
    %v1819 = vsel %vm97, %v1787, 0
    %1821 = vmatpush.msra.mxu0 0.0
    %1822 = vmatpush.msra.mxu0 0.0
    %1823 = vmatpush.msra.mxu0 0.0
    %1824 = vmatpush.msra.mxu0 0.0
    %1825 = vmatpush.msra.mxu0 0.0
    %1826 = vmatpush.msra.mxu0 0.0
    %1827 = vmatpush.msra.mxu0 0.0
    %1828 = vmatpush.msra.mxu0 0.0
    %1829 = vmatpush.msra.mxu0 0.0
    %1830 = vmatpush.msra.mxu0 0.0
    %1831 = vmatpush.msra.mxu0 0.0
    %1832 = vmatpush.msra.mxu0 0.0
    %1833 = vmatpush.msra.mxu0 0.0
    %1834 = vmatpush.msra.mxu0 %v1819
    %1835 = vmatpush.msra.mxu0 %v1786
    %1836 = vmatpush.msra.mxu0 %v1785
    %1837 = vmatmul.f32.gmra.mxu0 %v1789
    %v1838 = vpop.f32.mrf.mxu0
    %v1839 = vadd.f32 0.0, %v1838
    %1840 = vmatmul.f32.gmra.mxu0 %v1792
    %v1841 = vpop.f32.mrf.mxu0
    %v1842 = vadd.f32 0.0, %v1841
    %1843 = vmatmul.f32.gmra.mxu0 %v1795
    %v1844 = vpop.f32.mrf.mxu0
    %v1845 = vadd.f32 0.0, %v1844
    %1846 = vmatmul.f32.gmra.mxu0 %v1798
    %v1847 = vpop.f32.mrf.mxu0
    %1848 = vmatmul.f32.gmra.mxu0 %v1801
    %v1849 = vpop.f32.mrf.mxu0
    %1850 = vmatmul.f32.gmra.mxu0 %v1804
    %v1851 = vpop.f32.mrf.mxu0
    %v1852 = vadd.f32 0.0, %v1851
    %1853 = vmatmul.f32.gmra.mxu0 %v1807
    %v1854 = vpop.f32.mrf.mxu0
    %v1855 = vadd.f32 0.0, %v1854
    %1856 = vmatmul.f32.gmra.mxu0 %v1810
    %v1857 = vpop.f32.mrf.mxu0
    %v1858 = vadd.f32 0.0, %v1857
    %1859 = vmatmul.f32.gmra.mxu0 %v1813
    %v1860 = vpop.f32.mrf.mxu0
    %1861 = vmatmul.f32.gmra.mxu0 %v1816
    %v1862 = vpop.f32.mrf.mxu0
    %1863 = vdwg.mxu0
    %v1864 = vadd.f32 %v1768, %v1839
    %v1865 = vadd.f32 %v1769, %v1842
    %v1866 = vadd.f32 %v1770, %v1845
    %v1867 = vadd.f32 %v1771, %v1852
    %v1868 = vadd.f32 %v1772, %v1855
    %v1869 = vadd.f32 %v1773, %v1858
    %v1870 = vld [vmem:[%s0 + $0xe] sm:$0xff]
    %v1871 = vld [vmem:[%s0 + $0x16] sm:$0xff]
    %v1872 = vld [vmem:[%s0 + $0x1e] sm:$0xff]
    %v1873 = vld [vmem:[%s0 + $0x26] sm:$0xff]
    %v1874 = vld [vmem:[%s0 + $0x2e] sm:$0xff]
    %v1875 = vld [vmem:[%s0 + $0x36] sm:$0xff]
    %v1876 = vld [vmem:[%s0 + $0x3e] sm:$0xff]
    %v1877 = vld [vmem:[%s0 + $0x46] sm:$0xff]
    %v1878 = vld [vmem:[%s0 + $0x4e] sm:$0xff]
    %v1879 = vld [vmem:[%s0 + $0x56] sm:$0xff]
    %s1880 = scalar_lea.vmem %s3, 336
    %v1881 = vld [vmem:[%s1880] sm:$0xff]
    %v1882 = vld [vmem:[%s1880 + $0x8] sm:$0xff]
    %v1883 = vld [vmem:[%s1880 + $0x10] sm:$0x1f]
    %v1885 = vsel %vm66, %v1870, 0
    %v1888 = vsel %vm66, %v1871, 0
    %v1891 = vsel %vm66, %v1872, 0
    %v1894 = vsel %vm66, %v1873, 0
    %v1897 = vsel %vm66, %v1874, 0
    %v1900 = vsel %vm66, %v1875, 0
    %v1903 = vsel %vm66, %v1876, 0
    %v1906 = vsel %vm66, %v1877, 0
    %v1909 = vsel %vm66, %v1878, 0
    %v1912 = vsel %vm66, %v1879, 0
    %v1915 = vsel %vm97, %v1883, 0
    %1917 = vmatpush.msra.mxu0 0.0
    %1918 = vmatpush.msra.mxu0 0.0
    %1919 = vmatpush.msra.mxu0 0.0
    %1920 = vmatpush.msra.mxu0 0.0
    %1921 = vmatpush.msra.mxu0 0.0
    %1922 = vmatpush.msra.mxu0 0.0
    %1923 = vmatpush.msra.mxu0 0.0
    %1924 = vmatpush.msra.mxu0 0.0
    %1925 = vmatpush.msra.mxu0 0.0
    %1926 = vmatpush.msra.mxu0 0.0
    %1927 = vmatpush.msra.mxu0 0.0
    %1928 = vmatpush.msra.mxu0 0.0
    %1929 = vmatpush.msra.mxu0 0.0
    %1930 = vmatpush.msra.mxu0 %v1915
    %1931 = vmatpush.msra.mxu0 %v1882
    %1932 = vmatpush.msra.mxu0 %v1881
    %1933 = vmatmul.f32.gmra.mxu0 %v1885
    %v1934 = vpop.f32.mrf.mxu0
    %v1935 = vadd.f32 0.0, %v1934
    %1936 = vmatmul.f32.gmra.mxu0 %v1888
    %v1937 = vpop.f32.mrf.mxu0
    %v1938 = vadd.f32 0.0, %v1937
    %1939 = vmatmul.f32.gmra.mxu0 %v1891
    %v1940 = vpop.f32.mrf.mxu0
    %v1941 = vadd.f32 0.0, %v1940
    %1942 = vmatmul.f32.gmra.mxu0 %v1894
    %v1943 = vpop.f32.mrf.mxu0
    %1944 = vmatmul.f32.gmra.mxu0 %v1897
    %v1945 = vpop.f32.mrf.mxu0
    %1946 = vmatmul.f32.gmra.mxu0 %v1900
    %v1947 = vpop.f32.mrf.mxu0
    %v1948 = vadd.f32 0.0, %v1947
    %1949 = vmatmul.f32.gmra.mxu0 %v1903
    %v1950 = vpop.f32.mrf.mxu0
    %v1951 = vadd.f32 0.0, %v1950
    %1952 = vmatmul.f32.gmra.mxu0 %v1906
    %v1953 = vpop.f32.mrf.mxu0
    %v1954 = vadd.f32 0.0, %v1953
    %1955 = vmatmul.f32.gmra.mxu0 %v1909
    %v1956 = vpop.f32.mrf.mxu0
    %1957 = vmatmul.f32.gmra.mxu0 %v1912
    %v1958 = vpop.f32.mrf.mxu0
    %1959 = vdwg.mxu0
    %v1960 = vadd.f32 %v1864, %v1935
    %v1961 = vadd.f32 %v1865, %v1938
    %v1962 = vadd.f32 %v1866, %v1941
    %v1963 = vadd.f32 %v1867, %v1948
    %v1964 = vadd.f32 %v1868, %v1951
    %v1965 = vadd.f32 %v1869, %v1954
    %v1966 = vld [vmem:[%s0 + $0xf] sm:$0xff]
    %v1967 = vld [vmem:[%s0 + $0x17] sm:$0xff]
    %v1968 = vld [vmem:[%s0 + $0x1f] sm:$0xff]
    %v1969 = vld [vmem:[%s0 + $0x27] sm:$0xff]
    %v1970 = vld [vmem:[%s0 + $0x2f] sm:$0xff]
    %v1971 = vld [vmem:[%s0 + $0x37] sm:$0xff]
    %v1972 = vld [vmem:[%s0 + $0x3f] sm:$0xff]
    %v1973 = vld [vmem:[%s0 + $0x47] sm:$0xff]
    %v1974 = vld [vmem:[%s0 + $0x4f] sm:$0xff]
    %v1975 = vld [vmem:[%s0 + $0x57] sm:$0xff]
    %s1976 = scalar_lea.vmem %s3, 360
    %v1977 = vld [vmem:[%s1976] sm:$0xff]
    %v1978 = vld [vmem:[%s1976 + $0x8] sm:$0xff]
    %v1979 = vld [vmem:[%s1976 + $0x10] sm:$0x1f]
    %v1981 = vsel %vm66, %v1966, 0
    %v1984 = vsel %vm66, %v1967, 0
    %v1987 = vsel %vm66, %v1968, 0
    %v1990 = vsel %vm66, %v1969, 0
    %v1993 = vsel %vm66, %v1970, 0
    %v1996 = vsel %vm66, %v1971, 0
    %v1999 = vsel %vm66, %v1972, 0
    %v2002 = vsel %vm66, %v1973, 0
    %v2005 = vsel %vm66, %v1974, 0
    %v2008 = vsel %vm66, %v1975, 0
    %v2011 = vsel %vm97, %v1979, 0
    %2013 = vmatpush.msra.mxu0 0.0
    %2014 = vmatpush.msra.mxu0 0.0
    %2015 = vmatpush.msra.mxu0 0.0
    %2016 = vmatpush.msra.mxu0 0.0
    %2017 = vmatpush.msra.mxu0 0.0
    %2018 = vmatpush.msra.mxu0 0.0
    %2019 = vmatpush.msra.mxu0 0.0
    %2020 = vmatpush.msra.mxu0 0.0
    %2021 = vmatpush.msra.mxu0 0.0
    %2022 = vmatpush.msra.mxu0 0.0
    %2023 = vmatpush.msra.mxu0 0.0
    %2024 = vmatpush.msra.mxu0 0.0
    %2025 = vmatpush.msra.mxu0 0.0
    %2026 = vmatpush.msra.mxu0 %v2011
    %2027 = vmatpush.msra.mxu0 %v1978
    %2028 = vmatpush.msra.mxu0 %v1977
    %2029 = vmatmul.f32.gmra.mxu0 %v1981
    %v2030 = vpop.f32.mrf.mxu0
    %v2031 = vadd.f32 0.0, %v2030
    %2032 = vmatmul.f32.gmra.mxu0 %v1984
    %v2033 = vpop.f32.mrf.mxu0
    %v2034 = vadd.f32 0.0, %v2033
    %2035 = vmatmul.f32.gmra.mxu0 %v1987
    %v2036 = vpop.f32.mrf.mxu0
    %v2037 = vadd.f32 0.0, %v2036
    %2038 = vmatmul.f32.gmra.mxu0 %v1990
    %v2039 = vpop.f32.mrf.mxu0
    %2040 = vmatmul.f32.gmra.mxu0 %v1993
    %v2041 = vpop.f32.mrf.mxu0
    %2042 = vmatmul.f32.gmra.mxu0 %v1996
    %v2043 = vpop.f32.mrf.mxu0
    %v2044 = vadd.f32 0.0, %v2043
    %2045 = vmatmul.f32.gmra.mxu0 %v1999
    %v2046 = vpop.f32.mrf.mxu0
    %v2047 = vadd.f32 0.0, %v2046
    %2048 = vmatmul.f32.gmra.mxu0 %v2002
    %v2049 = vpop.f32.mrf.mxu0
    %v2050 = vadd.f32 0.0, %v2049
    %2051 = vmatmul.f32.gmra.mxu0 %v2005
    %v2052 = vpop.f32.mrf.mxu0
    %2053 = vmatmul.f32.gmra.mxu0 %v2008
    %v2054 = vpop.f32.mrf.mxu0
    %2055 = vdwg.mxu0
    %v2056 = vadd.f32 %v1960, %v2031
    %v2057 = vadd.f32 %v1961, %v2034
    %v2058 = vadd.f32 %v1962, %v2037
    %v2059 = vadd.f32 %v1963, %v2044
    %v2060 = vadd.f32 %v1964, %v2047
    %v2061 = vadd.f32 %v1965, %v2050
    %v2062 = vsel %vm824, %v2056, -inf
    %v2063 = vsel %vm824, %v2057, -inf
    %v2064 = vsel %vm828, %v2058, -inf
    %v2065 = vmax.f32 %v2062, %v2063
    %v2066 = vmax.f32 %v2065, %v2064
    %v2067 = vrot.slane %v2066, 4
    %v2068 = vmax.f32 %v2066, %v2067
    %v2069 = vrot.slane %v2068, 2
    %v2070 = vmax.f32 %v2068, %v2069
    %v2071 = vrot.slane %v2070, 1
    %v2072 = vmax.f32 %v2070, %v2071
    %v2073 = vsel %vm824, %v2059, -inf
    %v2074 = vsel %vm824, %v2060, -inf
    %v2075 = vsel %vm828, %v2061, -inf
    %v2076 = vmax.f32 %v2073, %v2074
    %v2077 = vmax.f32 %v2076, %v2075
    %v2078 = vrot.slane %v2077, 4
    %v2079 = vmax.f32 %v2077, %v2078
    %v2080 = vrot.slane %v2079, 2
    %v2081 = vmax.f32 %v2079, %v2080
    %v2082 = vrot.slane %v2081, 1
    %v2083 = vmax.f32 %v2081, %v2082
    %v2084 = vsel %vm852, %v2072, %v2083
    %v2085 = vld [vmem:[%s4] sm:$0x1]
    %v2087 = vperm.slane %v2085, 0
    %v2089 = vadd.f32 %v2084, %v2087
    %2091 = vrot.lane.b32.xlu0 %v2089, 16
    %v2092 = vpop.permute.xlu0 %2091
    %v2094 = vsel %vm824, %v858, %v2092
    %v2095 = vld [vmem:[%s5] sm:$0xff]
    %v2096 = vld [vmem:[%s5 + $0x8] sm:$0xff]
    %v2097 = vld [vmem:[%s5 + $0x10] sm:$0xff]
    %v2098 = vld [vmem:[%s5 + $0x18] sm:$0xff]
    %v2099 = vld [vmem:[%s6] sm:$0x1]
    %v2101 = vperm.slane %v2099, 0
    %vm2103 = vcmask 261120
    %v2105 = vsel %vm2103, %v2094, 0
    %2107 = vmatpush.msra.mxu0 0.0
    %2108 = vmatpush.msra.mxu0 0.0
    %2109 = vmatpush.msra.mxu0 0.0
    %2110 = vmatpush.msra.mxu0 0.0
    %2111 = vmatpush.msra.mxu0 0.0
    %2112 = vmatpush.msra.mxu0 0.0
    %2113 = vmatpush.msra.mxu0 0.0
    %2114 = vmatpush.msra.mxu0 0.0
    %2115 = vmatpush.msra.mxu0 0.0
    %2116 = vmatpush.msra.mxu0 0.0
    %2117 = vmatpush.msra.mxu0 0.0
    %2118 = vmatpush.msra.mxu0 0.0
    %2119 = vmatpush.msra.mxu0 %v2098
    %2120 = vmatpush.msra.mxu0 %v2097
    %2121 = vmatpush.msra.mxu0 %v2096
    %2122 = vmatpush.msra.mxu0 %v2095
    %2123 = vmatmul.f32.gmra.mxu0 %v2105
    %v2124 = vpop.f32.mrf.mxu0
    %v2125 = vadd.f32 %v2101, %v2124
    %2126 = vdwg.mxu0
    %v2127 = vmax.f32 %v2125, 0.0
    %v2128 = vld [vmem:[%s7] sm:$0xff]
    %v2129 = vld [vmem:[%s7 + $0x8] sm:$0xf]
    %v2130 = vld [vmem:[%s8] sm:$0x1]
    %v2132 = vperm.slane %v2130, 0
    %vm2134 = vcmask 97280
    %v2136 = vsel %vm2134, %v2127, 0
    %vm2138 = vcmask 1043456
    %v2140 = vsel %vm2138, %v2129, 0
    %2142 = vmatpush.msra.mxu0 0.0
    %2143 = vmatpush.msra.mxu0 0.0
    %2144 = vmatpush.msra.mxu0 0.0
    %2145 = vmatpush.msra.mxu0 0.0
    %2146 = vmatpush.msra.mxu0 0.0
    %2147 = vmatpush.msra.mxu0 0.0
    %2148 = vmatpush.msra.mxu0 0.0
    %2149 = vmatpush.msra.mxu0 0.0
    %2150 = vmatpush.msra.mxu0 0.0
    %2151 = vmatpush.msra.mxu0 0.0
    %2152 = vmatpush.msra.mxu0 0.0
    %2153 = vmatpush.msra.mxu0 0.0
    %2154 = vmatpush.msra.mxu0 0.0
    %2155 = vmatpush.msra.mxu0 0.0
    %2156 = vmatpush.msra.mxu0 %v2140
    %2157 = vmatpush.msra.mxu0 %v2128
    %2158 = vmatmul.f32.gmra.mxu0 %v2136
    %v2159 = vpop.f32.mrf.mxu0
    %v2160 = vadd.f32 %v2132, %v2159
    %2161 = vdwg.mxu0
    %v2162 = vmax.f32 %v2160, 0.0
    %v2163 = vld [vmem:[%s9] sm:$0xff]
    %v2164 = vld [vmem:[%s9 + $0x8] sm:$0xf]
    %v2165 = vld [vmem:[%s10] sm:$0x1]
    %v2167 = vperm.slane %v2165, 0
    %v2170 = vsel %vm2134, %v2162, 0
    %v2173 = vsel %vm2138, %v2164, 0
    %2175 = vmatpush.msra.mxu0 0.0
    %2176 = vmatpush.msra.mxu0 0.0
    %2177 = vmatpush.msra.mxu0 0.0
    %2178 = vmatpush.msra.mxu0 0.0
    %2179 = vmatpush.msra.mxu0 0.0
    %2180 = vmatpush.msra.mxu0 0.0
    %2181 = vmatpush.msra.mxu0 0.0
    %2182 = vmatpush.msra.mxu0 0.0
    %2183 = vmatpush.msra.mxu0 0.0
    %2184 = vmatpush.msra.mxu0 0.0
    %2185 = vmatpush.msra.mxu0 0.0
    %2186 = vmatpush.msra.mxu0 0.0
    %2187 = vmatpush.msra.mxu0 0.0
    %2188 = vmatpush.msra.mxu0 0.0
    %2189 = vmatpush.msra.mxu0 %v2173
    %2190 = vmatpush.msra.mxu0 %v2163
    %2191 = vmatmul.f32.gmra.mxu0 %v2170
    %v2192 = vpop.f32.mrf.mxu0
    %v2193 = vadd.f32 %v2167, %v2192
    %2194 = vdwg.mxu0
    %v2195 = vsub.f32 0.0, %v2193
    %v2196 = vmul.f32 %v2195, 1.442695
    %v2197 = vpow.pop %v2196
    %v2198 = vadd.f32 %v2197, 1.0
    %v2199 = vrcp.pop %v2198
    %vm2200 = vcmask 91136
    %2201 = vst.msk [vmem:[#allocation2] sm:$0x3] %vm2200, %v2199
    // Predicated region
    $region46: #{tpu_custom_call.1} parent=1 // pred_check
      _
    $region47: #{tpu_custom_call.1} parent=1 // pred_check_branch
      %2203 = sbr.rel (0) target = $region49
    $region48: #{tpu_custom_call.1} parent=1 // pred_region
      %2205 = vsyncadd [#allocation3], 0
      %s2207 = sshll.u32 [#allocation2], 4
      %s2208 = int_to_ptr.vmem [resolvable:$true] %s2207
      %s2209 = sshll.u32 %s11, 4
      %s2210 = int_to_ptr.hbm [resolvable:$true] %s2209
      %2212 = dma.vmem_to_hbm [thread:$0]  %s2208, 32, %s2210, [#allocation3]
    $region49: #{tpu_custom_call.1} parent=1 // pred_fallthru
      _
    // Predicated region
    $region50: #{tpu_custom_call.1} parent=1 // pred_check
      _
    $region51: #{tpu_custom_call.1} parent=1 // pred_check_branch
      %2214 = sbr.rel (0) target = $region53
    $region52: #{tpu_custom_call.1} parent=1 // pred_region
      %2216 = dma.done [#allocation3], 32
    $region53: #{tpu_custom_call.1} parent=1 // pred_fallthru
      _
    %2217 = vsyncpa [#allocation3], 1

</llo_original>
